<compile_context>
chip_gen: v6e
topology: v6e:2x2x1
jax: 0.10.0
libtpu: 0.0.40
codegen_flags: <defaults>
</compile_context>

<pallas_src>
import math
import numpy as np
import jax
import jax.numpy as jnp
from jax import lax
from jax.experimental import pallas as pl
from jax.experimental.pallas import tpu as pltpu

F = 128        # feature width (conv1 input padded 10 -> 128)
G_PAD = 8      # graph dimension padded 2 -> 8 (sublane-dense operands)

_VMEM = pl.BlockSpec(memory_space=pltpu.MemorySpace.VMEM)


# -----------------------------------------------------------------------------
# Kernel 1: fused SAGEConv(mean) + bias + ReLU + TopKPooling score projection.
#   grid = (N/TM,)   -- 1-D, fully parallel row tiles; X / weights resident.
#   A row-slab (TM, N) @ resident X (N, F) does the whole neighbor aggregation
#   in one MXU pass per tile; inv_deg (precomputed in XLA) turns it into the
#   mean; lin_l / lin_r / bias / ReLU / pooling-score are fused in the epilogue.
# -----------------------------------------------------------------------------
def _sage_kernel(a_ref, x_ref, idg_ref, wl_ref, wr_ref, b_ref, p_ref,
                 xo_ref, s_ref):
    tm = xo_ref.shape[0]
    row0 = pl.multiple_of(pl.program_id(0) * tm, tm)

    # Neighbor sum over ALL sources (dropped/padded source rows of X are zero,
    # so no per-step validity mask is needed), then mean via precomputed 1/deg.
    agg = jnp.dot(a_ref[...], x_ref[...], preferred_element_type=jnp.float32)
    agg = agg * idg_ref[...]                                    # (TM, F) f32

    x_self = x_ref[pl.ds(row0, tm), :]                          # self rows from resident X
    h = jnp.dot(agg.astype(jnp.bfloat16), wl_ref[...],
                preferred_element_type=jnp.float32)             # lin_l(agg)
    h = h + jnp.dot(x_self, wr_ref[...],
                    preferred_element_type=jnp.float32)         # + lin_r(x)
    h = jnp.maximum(h + b_ref[...], 0.0)                        # bias + F.relu
    xo_ref[...] = h.astype(xo_ref.dtype)

    # TopKPooling score (x . w)/||w|| as a lane-dense row-slab: p (8,F) @ h^T
    # (row 0 = w/||w||, rows 1..7 zero) -> (8, TM), unmasked vst.
    s_ref[...] = lax.dot_general(p_ref[...], h, (((1,), (1,)), ((), ())),
                                 preferred_element_type=jnp.float32)


def sage_conv_relu_score(a, x, inv_deg, wl, wr, b, p_pad):
    n, f = x.shape
    tm = 256 if n % 256 == 0 else 128            # 256 matches v6e/v7x MXU tile
    assert n % tm == 0
    # NOTE: A block is (tm, n); for very large N on v7x (64 MiB VMEM) drop tm
    # or reintroduce a K-tiled reduction axis.
    return pl.pallas_call(
        _sage_kernel,
        out_shape=(jax.ShapeDtypeStruct((n, f), jnp.bfloat16),
                   jax.ShapeDtypeStruct((G_PAD, n), jnp.float32)),
        grid=(n // tm,),
        in_specs=[
            pl.BlockSpec((tm, n), lambda i: (i, 0)),       # A row slab (edge counts)
            pl.BlockSpec((n, f), lambda i: (0, 0)),        # X resident
            pl.BlockSpec((tm, 1), lambda i: (i, 0)),       # 1 / degree (precomputed)
            pl.BlockSpec((f, f), lambda i: (0, 0)),        # W_l
            pl.BlockSpec((f, f), lambda i: (0, 0)),        # W_r
            pl.BlockSpec((1, f), lambda i: (0, 0)),        # bias
            pl.BlockSpec((G_PAD, f), lambda i: (0, 0)),    # pool vector (row 0 = w/||w||)
        ],
        out_specs=(pl.BlockSpec((tm, f), lambda i: (i, 0)),
                   pl.BlockSpec((G_PAD, tm), lambda i: (0, i))),
        compiler_params=pltpu.CompilerParams(
            dimension_semantics=("parallel",)),
    )(a, x, inv_deg, wl, wr, b, p_pad)


# -----------------------------------------------------------------------------
# Kernel 2: fused MLP head lin3(relu(lin2(relu(lin1(x)))))  (dropout = eval id).
# Input graph dim padded to 8; lin3 output padded to 128 lanes; sliced outside.
# -----------------------------------------------------------------------------
def _mlp_kernel(x_ref, w1_ref, b1_ref, w2_ref, b2_ref, w3_ref, b3_ref, o_ref):
    h = jnp.dot(x_ref[...], w1_ref[...], preferred_element_type=jnp.float32) + b1_ref[...]
    h = jnp.maximum(h, 0.0)                                                  # act1
    h = jnp.dot(h, w2_ref[...], preferred_element_type=jnp.float32) + b2_ref[...]
    h = jnp.maximum(h, 0.0)                                                  # act2
    # TODO(synk): F.dropout(p=0.5, training=True) not implemented; eval-mode identity used.
    o_ref[...] = jnp.dot(h, w3_ref[...], preferred_element_type=jnp.float32) + b3_ref[...]


def mlp_head(x, w1, b1, w2, b2, w3, b3):
    g = x.shape[0]
    return pl.pallas_call(
        _mlp_kernel,
        out_shape=jax.ShapeDtypeStruct((g, w3.shape[1]), jnp.float32),
        in_specs=[_VMEM] * 7,
        out_specs=_VMEM,
    )(x, w1, b1, w2, b2, w3, b3)


# -----------------------------------------------------------------------------
# Parameters (deterministic init; shapes from Net.__init__), pre-padded/hoisted.
# -----------------------------------------------------------------------------
def init_params(key):
    def uni(k, shape, fan_in):
        s = 1.0 / math.sqrt(fan_in)
        return jax.random.uniform(k, shape, jnp.float32, -s, s)

    keys = iter(jax.random.split(key, 32))
    params = {}
    for i, (fi, fo) in enumerate([(10, 128), (128, 128), (128, 128)], start=1):
        wl = uni(next(keys), (fi, fo), fi)      # lin_l weight (on aggregated)
        wr = uni(next(keys), (fi, fo), fi)      # lin_r weight (root)
        if fi < F:                              # pad conv1 input dim 10 -> 128 (lane-dense)
            wl = jnp.concatenate([wl, jnp.zeros((F - fi, fo), jnp.float32)], axis=0)
            wr = jnp.concatenate([wr, jnp.zeros((F - fi, fo), jnp.float32)], axis=0)
        params[f"conv{i}_wl"] = wl.astype(jnp.bfloat16)
        params[f"conv{i}_wr"] = wr.astype(jnp.bfloat16)
        params[f"conv{i}_b"] = uni(next(keys), (1, fo), fi)
        w = uni(next(keys), (fo,), fo)          # TopKPooling projection
        p = w / jnp.sqrt(jnp.sum(w * w))        # hoisted w/||w||
        params[f"pool{i}_p"] = jnp.zeros((G_PAD, fo), jnp.float32).at[0].set(p)
    for name, (fi, fo) in [("lin1", (128, 128)), ("lin2", (128, 64)), ("lin3", (64, 5))]:
        w = uni(next(keys), (fi, fo), fi)
        b = uni(next(keys), (fo,), fi)
        if name == "lin3":                      # pad output 5 -> 128 for an unmasked store
            w = jnp.concatenate([w, jnp.zeros((fi, 128 - fo), jnp.float32)], axis=1)
            b = jnp.concatenate([b, jnp.zeros((128 - fo,), jnp.float32)])
        params[f"{name}_w"] = w
        params[f"{name}_b"] = b.reshape(1, -1)
    return params


# -----------------------------------------------------------------------------
# Full forward pass (one jit, everything stays on device).
# Nodes live in a fixed padded index space; TopKPooling only updates a validity
# mask (dropped nodes' features are zeroed), so the dense adjacency is built
# once on the host and re-normalized per layer via a precomputed 1/degree.
# -----------------------------------------------------------------------------
def make_forward(params, batch_np, n_pad, ratio=0.8, num_layers=3):
    g_count = int(batch_np.max()) + 1
    n_real = batch_np.shape[0]
    assert g_count <= G_PAD

    batch_pad = np.full((n_pad,), -1, np.int32)
    batch_pad[:n_real] = batch_np.astype(np.int32)

    # Static per-graph top-k schedule: k_g = ceil(ratio * n_g), layer by layer.
    counts = [int((batch_np == g).sum()) for g in range(g_count)]
    k_sched = []
    c = list(counts)
    for _ in range(num_layers):
        c = [int(math.ceil(ratio * v)) for v in c]
        k_sched.append(jnp.asarray(np.asarray(c, np.int32)))

    batch_ids = jnp.asarray(batch_pad)
    onehot = jnp.asarray((np.arange(G_PAD)[:, None] == batch_pad[None, :]).astype(np.float32))
    node_idx = np.arange(n_pad, dtype=np.int32)
    # Layer-invariant pieces of the rank computation (hoisted out of the loop).
    same_graph = jnp.asarray((batch_pad[:, None] == batch_pad[None, :]) &
                             (batch_pad[:, None] >= 0))
    idx_lt = jnp.asarray(node_idx[None, :] < node_idx[:, None])

    def forward(a0, x0, valid0):
        x, valid = x0, valid0
        x_sum = jnp.zeros((G_PAD, F), jnp.float32)
        for layer in range(1, num_layers + 1):
            # 1/degree over currently-valid source nodes (tiny XLA matvec).
            deg = jnp.einsum("ij,j->i", a0, valid.astype(jnp.bfloat16),
                             preferred_element_type=jnp.float32)
            inv_deg = (1.0 / jnp.maximum(deg, 1.0)).reshape(-1, 1)

            # x = relu(SAGEConv(x, ei)) + fused TopKPooling scores (Pallas).
            h, s_out = sage_conv_relu_score(
                a0, x, inv_deg,
                params[f"conv{layer}_wl"], params[f"conv{layer}_wr"],
                params[f"conv{layer}_b"], params[f"pool{layer}_p"])
            score = s_out[0]                                   # (N,) lane-dense row 0

            # TopKPooling node selection (static shapes; rank-based top-k ==
            # stable descending sort, ties -> lower node index).
            s = jnp.where(valid > 0, score, -jnp.inf)
            beats = (s[None, :] > s[:, None]) | ((s[None, :] == s[:, None]) & idx_lt)
            rank = jnp.sum(same_graph & (valid[None, :] > 0) & beats, axis=1)
            k_i = jnp.where(batch_ids >= 0,
                            k_sched[layer - 1][jnp.clip(batch_ids, 0, g_count - 1)], 0)
            keep = ((valid > 0) & (rank < k_i)).astype(jnp.float32)

            # x = x * tanh(score) on kept nodes; x_i = gap(x, batch).
            # Tiny (g,N)x(N,128) work -> plain XLA (avoids extra kernel launches).
            gate = jnp.tanh(score) * keep
            xg = h.astype(jnp.float32) * gate[:, None]
            cnt = jnp.maximum(onehot @ keep, 1.0)
            pmat = onehot * keep[None, :] / cnt[:, None]
            x_sum = x_sum + pmat @ xg

            x, valid = xg.astype(jnp.bfloat16), keep

        out = mlp_head(x_sum,
                       params["lin1_w"], params["lin1_b"],
                       params["lin2_w"], params["lin2_b"],
                       params["lin3_w"], params["lin3_b"])
        return out[:g_count, :5]                 # un-pad graphs (2) and classes (5)

    return jax.jit(forward)


# -----------------------------------------------------------------------------
if __name__ == "__main__":
    key = jax.random.PRNGKey(0)
    k_x, k_e, k_p = jax.random.split(key, 3)

    num_graphs = 2
    nodes_per_graph = 60
    edges_per_graph = 240
    n_nodes = num_graphs * nodes_per_graph
    N_PAD = 256                                  # multiple of the row tile

    # Node features: [N, 10] (SAGEConv(10, 128) input dim)
    x_raw = jax.random.normal(k_x, (n_nodes, 10), jnp.float32)

    # Random intra-graph edges, edge_index layout [2, E] = [source; target]
    edge_blocks = []
    for g, ek in enumerate(jax.random.split(k_e, num_graphs)):
        e = jax.random.randint(ek, (2, edges_per_graph), 0, nodes_per_graph)
        edge_blocks.append(np.asarray(e, np.int64) + g * nodes_per_graph)
    edge_index = np.concatenate(edge_blocks, axis=1)
    batch = np.repeat(np.arange(num_graphs, dtype=np.int64), nodes_per_graph)

    params = init_params(k_p)

    # One-time host preprocessing: dense edge-count adjacency [target, source],
    # feature padding 10 -> 128, node padding to N_PAD with a validity mask.
    a0 = np.zeros((N_PAD, N_PAD), np.float32)
    np.add.at(a0, (edge_index[1], edge_index[0]), 1.0)
    x0 = np.zeros((N_PAD, F), np.float32)
    x0[:n_nodes, :10] = np.asarray(x_raw)
    valid0 = np.zeros((N_PAD,), np.float32)
    valid0[:n_nodes] = 1.0

    forward = make_forward(params, batch, N_PAD)
    out = forward(jnp.asarray(a0, jnp.bfloat16),    # bf16 A: exact for small edge counts
                  jnp.asarray(x0, jnp.bfloat16),
                  jnp.asarray(valid0, jnp.float32))
    out = jax.block_until_ready(out)

    assert out.shape == (num_graphs, 5) and out.dtype == jnp.float32
    assert bool(jnp.all(jnp.isfinite(out)))
    print("KERNEL_OK")
</pallas_src>

<mosaic_0001>
module attributes {stable_mosaic.version = 11 : i64} {
  func.func @_sage_kernel(%arg0: i32, %arg1: memref<256x256xbf16, #tpu.memory_space<vmem>>, %arg2: memref<256x128xbf16, #tpu.memory_space<vmem>>, %arg3: memref<256x1xf32, #tpu.memory_space<vmem>>, %arg4: memref<128x128xbf16, #tpu.memory_space<vmem>>, %arg5: memref<128x128xbf16, #tpu.memory_space<vmem>>, %arg6: memref<1x128xf32, #tpu.memory_space<vmem>>, %arg7: memref<8x128xf32, #tpu.memory_space<vmem>>, %arg8: memref<256x128xbf16, #tpu.memory_space<vmem>>, %arg9: memref<8x256xf32, #tpu.memory_space<vmem>>) attributes {dimension_semantics = [#tpu.dimension_semantics<parallel>], iteration_bounds = array<i64: 1>, scalar_prefetch = 0 : i64, scratch_operands = 0 : i64, tpu.core_type = #tpu.core_type<tc>, window_params = [{transform_indices = @transform_0, window_bounds = array<i64: 256, 256>}, {pipeline_mode = #tpu.pipeline_mode<synchronous>, transform_indices = @transform_1, window_bounds = array<i64: 256, 128>}, {transform_indices = @transform_2, window_bounds = array<i64: 256, 1>}, {pipeline_mode = #tpu.pipeline_mode<synchronous>, transform_indices = @transform_3, window_bounds = array<i64: 128, 128>}, {pipeline_mode = #tpu.pipeline_mode<synchronous>, transform_indices = @transform_4, window_bounds = array<i64: 128, 128>}, {pipeline_mode = #tpu.pipeline_mode<synchronous>, transform_indices = @transform_5, window_bounds = array<i64: 1, 128>}, {pipeline_mode = #tpu.pipeline_mode<synchronous>, transform_indices = @transform_6, window_bounds = array<i64: 8, 128>}, {transform_indices = @transform_7, window_bounds = array<i64: 256, 128>}, {transform_indices = @transform_8, window_bounds = array<i64: 8, 256>}]} {
    %c256_i32 = arith.constant 256 : i32
    %0 = arith.muli %arg0, %c256_i32 : i32
    %1 = tpu.assume_multiple %0, 256 : i32
    %c0 = arith.constant 0 : index
    %c0_0 = arith.constant 0 : index
    %2 = vector.load %arg1[%c0, %c0_0] : memref<256x256xbf16, #tpu.memory_space<vmem>>, vector<256x256xbf16>
    %c0_1 = arith.constant 0 : index
    %c0_2 = arith.constant 0 : index
    %3 = vector.load %arg2[%c0_1, %c0_2] : memref<256x128xbf16, #tpu.memory_space<vmem>>, vector<256x128xbf16>
    %cst = arith.constant dense<0.000000e+00> : vector<256x128xf32>
    %4 = tpu.matmul %2, %3, %cst {dimension_numbers = #tpu.dot_dimension_numbers<[1], [0], [0], [1], [0, 0, 1, 1], [], []>} : vector<256x256xbf16>, vector<256x128xbf16>, vector<256x128xf32> -> vector<256x128xf32>
    %c0_3 = arith.constant 0 : index
    %c0_4 = arith.constant 0 : index
    %5 = vector.load %arg3[%c0_3, %c0_4] : memref<256x1xf32, #tpu.memory_space<vmem>>, vector<256x1xf32>
    %6 = vector.broadcast %5 : vector<256x1xf32> to vector<256x128xf32>
    %7 = arith.mulf %4, %6 : vector<256x128xf32>
    %8 = arith.index_cast %1 : i32 to index
    %c0_5 = arith.constant 0 : index
    %9 = vector.load %arg2[%8, %c0_5] : memref<256x128xbf16, #tpu.memory_space<vmem>>, vector<256x128xbf16>
    %10 = arith.truncf %7 : vector<256x128xf32> to vector<256x128xbf16>
    %c0_6 = arith.constant 0 : index
    %c0_7 = arith.constant 0 : index
    %11 = vector.load %arg4[%c0_6, %c0_7] : memref<128x128xbf16, #tpu.memory_space<vmem>>, vector<128x128xbf16>
    %cst_8 = arith.constant dense<0.000000e+00> : vector<256x128xf32>
    %12 = tpu.matmul %10, %11, %cst_8 {dimension_numbers = #tpu.dot_dimension_numbers<[1], [0], [0], [1], [0, 0, 1, 1], [], []>} : vector<256x128xbf16>, vector<128x128xbf16>, vector<256x128xf32> -> vector<256x128xf32>
    %c0_9 = arith.constant 0 : index
    %c0_10 = arith.constant 0 : index
    %13 = vector.load %arg5[%c0_9, %c0_10] : memref<128x128xbf16, #tpu.memory_space<vmem>>, vector<128x128xbf16>
    %cst_11 = arith.constant dense<0.000000e+00> : vector<256x128xf32>
    %14 = tpu.matmul %9, %13, %cst_11 {dimension_numbers = #tpu.dot_dimension_numbers<[1], [0], [0], [1], [0, 0, 1, 1], [], []>} : vector<256x128xbf16>, vector<128x128xbf16>, vector<256x128xf32> -> vector<256x128xf32>
    %15 = arith.addf %12, %14 : vector<256x128xf32>
    %c0_12 = arith.constant 0 : index
    %c0_13 = arith.constant 0 : index
    %16 = vector.load %arg6[%c0_12, %c0_13] : memref<1x128xf32, #tpu.memory_space<vmem>>, vector<1x128xf32>
    %17 = vector.broadcast %16 : vector<1x128xf32> to vector<256x128xf32>
    %18 = arith.addf %15, %17 : vector<256x128xf32>
    %cst_14 = arith.constant 0.000000e+00 : f32
    %19 = vector.broadcast %cst_14 : f32 to vector<256x128xf32>
    %20 = arith.maximumf %18, %19 : vector<256x128xf32>
    %21 = arith.truncf %20 : vector<256x128xf32> to vector<256x128xbf16>
    %c0_15 = arith.constant 0 : index
    %c0_16 = arith.constant 0 : index
    %22 = vector.load %arg8[%c0_15, %c0_16] : memref<256x128xbf16, #tpu.memory_space<vmem>>, vector<256x128xbf16>
    tpu.vector_store %arg8[%c0_15, %c0_16], %21 {strides = array<i32>} : memref<256x128xbf16, #tpu.memory_space<vmem>>, vector<256x128xbf16>,
    %c0_17 = arith.constant 0 : index
    %c0_18 = arith.constant 0 : index
    %23 = vector.load %arg7[%c0_17, %c0_18] : memref<8x128xf32, #tpu.memory_space<vmem>>, vector<8x128xf32>
    %cst_19 = arith.constant dense<0.000000e+00> : vector<8x256xf32>
    %24 = tpu.matmul %23, %20, %cst_19 {dimension_numbers = #tpu.dot_dimension_numbers<[1], [1], [0], [0], [0, 0, 1, 0], [], []>} : vector<8x128xf32>, vector<256x128xf32>, vector<8x256xf32> -> vector<8x256xf32>
    %c0_20 = arith.constant 0 : index
    %c0_21 = arith.constant 0 : index
    %25 = vector.load %arg9[%c0_20, %c0_21] : memref<8x256xf32, #tpu.memory_space<vmem>>, vector<8x256xf32>
    tpu.vector_store %arg9[%c0_20, %c0_21], %24 {strides = array<i32>} : memref<8x256xf32, #tpu.memory_space<vmem>>, vector<8x256xf32>,
    return
  }
  func.func @transform_0(%arg0: i32) -> (i32, i32) {
    %c0_i32 = arith.constant 0 : i32
    %c0_i32_0 = arith.constant 0 : i32
    return %arg0, %c0_i32 : i32, i32
  }
  func.func @transform_1(%arg0: i32) -> (i32, i32) {
    %c0_i32 = arith.constant 0 : i32
    %c0_i32_0 = arith.constant 0 : i32
    %c0_i32_1 = arith.constant 0 : i32
    return %c0_i32, %c0_i32_0 : i32, i32
  }
  func.func @transform_2(%arg0: i32) -> (i32, i32) {
    %c0_i32 = arith.constant 0 : i32
    %c0_i32_0 = arith.constant 0 : i32
    return %arg0, %c0_i32 : i32, i32
  }
  func.func @transform_3(%arg0: i32) -> (i32, i32) {
    %c0_i32 = arith.constant 0 : i32
    %c0_i32_0 = arith.constant 0 : i32
    %c0_i32_1 = arith.constant 0 : i32
    return %c0_i32, %c0_i32_0 : i32, i32
  }
  func.func @transform_4(%arg0: i32) -> (i32, i32) {
    %c0_i32 = arith.constant 0 : i32
    %c0_i32_0 = arith.constant 0 : i32
    %c0_i32_1 = arith.constant 0 : i32
    return %c0_i32, %c0_i32_0 : i32, i32
  }
  func.func @transform_5(%arg0: i32) -> (i32, i32) {
    %c0_i32 = arith.constant 0 : i32
    %c0_i32_0 = arith.constant 0 : i32
    %c0_i32_1 = arith.constant 0 : i32
    return %c0_i32, %c0_i32_0 : i32, i32
  }
  func.func @transform_6(%arg0: i32) -> (i32, i32) {
    %c0_i32 = arith.constant 0 : i32
    %c0_i32_0 = arith.constant 0 : i32
    %c0_i32_1 = arith.constant 0 : i32
    return %c0_i32, %c0_i32_0 : i32, i32
  }
  func.func @transform_7(%arg0: i32) -> (i32, i32) {
    %c0_i32 = arith.constant 0 : i32
    %c0_i32_0 = arith.constant 0 : i32
    return %arg0, %c0_i32 : i32, i32
  }
  func.func @transform_8(%arg0: i32) -> (i32, i32) {
    %c0_i32 = arith.constant 0 : i32
    %c0_i32_0 = arith.constant 0 : i32
    return %c0_i32, %arg0 : i32, i32
  }
}

module attributes {stable_mosaic.version = 11 : i64} {
  func.func @_mlp_kernel(%arg0: memref<8x128xf32, #tpu.memory_space<vmem>>, %arg1: memref<128x128xf32, #tpu.memory_space<vmem>>, %arg2: memref<1x128xf32, #tpu.memory_space<vmem>>, %arg3: memref<128x64xf32, #tpu.memory_space<vmem>>, %arg4: memref<1x64xf32, #tpu.memory_space<vmem>>, %arg5: memref<64x128xf32, #tpu.memory_space<vmem>>, %arg6: memref<1x128xf32, #tpu.memory_space<vmem>>, %arg7: memref<8x128xf32, #tpu.memory_space<vmem>>) attributes {dimension_semantics = [], scalar_prefetch = 0 : i64, scratch_operands = 0 : i64, tpu.core_type = #tpu.core_type<tc>} {
    %c0 = arith.constant 0 : index
    %c0_0 = arith.constant 0 : index
    %0 = vector.load %arg0[%c0, %c0_0] : memref<8x128xf32, #tpu.memory_space<vmem>>, vector<8x128xf32>
    %c0_1 = arith.constant 0 : index
    %c0_2 = arith.constant 0 : index
    %1 = vector.load %arg1[%c0_1, %c0_2] : memref<128x128xf32, #tpu.memory_space<vmem>>, vector<128x128xf32>
    %cst = arith.constant dense<0.000000e+00> : vector<8x128xf32>
    %2 = tpu.matmul %0, %1, %cst {dimension_numbers = #tpu.dot_dimension_numbers<[1], [0], [0], [1], [0, 0, 1, 1], [], []>} : vector<8x128xf32>, vector<128x128xf32>, vector<8x128xf32> -> vector<8x128xf32>
    %c0_3 = arith.constant 0 : index
    %c0_4 = arith.constant 0 : index
    %3 = vector.load %arg2[%c0_3, %c0_4] : memref<1x128xf32, #tpu.memory_space<vmem>>, vector<1x128xf32>
    %4 = vector.broadcast %3 : vector<1x128xf32> to vector<8x128xf32>
    %5 = arith.addf %2, %4 : vector<8x128xf32>
    %cst_5 = arith.constant 0.000000e+00 : f32
    %6 = vector.broadcast %cst_5 : f32 to vector<8x128xf32>
    %7 = arith.maximumf %5, %6 : vector<8x128xf32>
    %c0_6 = arith.constant 0 : index
    %c0_7 = arith.constant 0 : index
    %8 = vector.load %arg3[%c0_6, %c0_7] : memref<128x64xf32, #tpu.memory_space<vmem>>, vector<128x64xf32>
    %cst_8 = arith.constant dense<0.000000e+00> : vector<8x64xf32>
    %9 = tpu.matmul %7, %8, %cst_8 {dimension_numbers = #tpu.dot_dimension_numbers<[1], [0], [0], [1], [0, 0, 1, 1], [], []>} : vector<8x128xf32>, vector<128x64xf32>, vector<8x64xf32> -> vector<8x64xf32>
    %c0_9 = arith.constant 0 : index
    %c0_10 = arith.constant 0 : index
    %10 = vector.load %arg4[%c0_9, %c0_10] : memref<1x64xf32, #tpu.memory_space<vmem>>, vector<1x64xf32>
    %11 = vector.broadcast %10 : vector<1x64xf32> to vector<8x64xf32>
    %12 = arith.addf %9, %11 : vector<8x64xf32>
    %cst_11 = arith.constant 0.000000e+00 : f32
    %13 = vector.broadcast %cst_11 : f32 to vector<8x64xf32>
    %14 = arith.maximumf %12, %13 : vector<8x64xf32>
    %c0_12 = arith.constant 0 : index
    %c0_13 = arith.constant 0 : index
    %15 = vector.load %arg5[%c0_12, %c0_13] : memref<64x128xf32, #tpu.memory_space<vmem>>, vector<64x128xf32>
    %cst_14 = arith.constant dense<0.000000e+00> : vector<8x128xf32>
    %16 = tpu.matmul %14, %15, %cst_14 {dimension_numbers = #tpu.dot_dimension_numbers<[1], [0], [0], [1], [0, 0, 1, 1], [], []>} : vector<8x64xf32>, vector<64x128xf32>, vector<8x128xf32> -> vector<8x128xf32>
    %c0_15 = arith.constant 0 : index
    %c0_16 = arith.constant 0 : index
    %17 = vector.load %arg6[%c0_15, %c0_16] : memref<1x128xf32, #tpu.memory_space<vmem>>, vector<1x128xf32>
    %18 = vector.broadcast %17 : vector<1x128xf32> to vector<8x128xf32>
    %19 = arith.addf %16, %18 : vector<8x128xf32>
    %c0_17 = arith.constant 0 : index
    %c0_18 = arith.constant 0 : index
    %20 = vector.load %arg7[%c0_17, %c0_18] : memref<8x128xf32, #tpu.memory_space<vmem>>, vector<8x128xf32>
    tpu.vector_store %arg7[%c0_17, %c0_18], %19 {strides = array<i32>} : memref<8x128xf32, #tpu.memory_space<vmem>>, vector<8x128xf32>,
    return
  }
}

</mosaic_0001>

<llo_original>
// kernel: forward.7
$region0: #{forward.7}
  #allocation0 [shape = 'u32[]', space=smem, size = 0x4, offset = 0x4, fixed_abs, tag = 'smem constant byte address 0x4 - core index']
  #allocation1 [shape = 'u32[144,128]{1,0:T(1,128)}', space=vmem, size = 0x12000, scoped, tag = 'internal scratch']
  %s0 = inlined_call_operand.vmem [shape: f32[8,128], index: 0, kind: input, shape index: {}]
  %s1 = inlined_call_operand.vmem [shape: f32[128,128], index: 1, kind: input, shape index: {}]
  %s2 = inlined_call_operand.vmem [shape: f32[1,128], index: 2, kind: input, shape index: {}]
  %s3 = inlined_call_operand.vmem [shape: f32[128,64], index: 3, kind: input, shape index: {}]
  %s4 = inlined_call_operand.vmem [shape: f32[1,64], index: 4, kind: input, shape index: {}]
  %s5 = inlined_call_operand.vmem [shape: f32[64,128], index: 5, kind: input, shape index: {}]
  %s6 = inlined_call_operand.vmem [shape: f32[1,128], index: 6, kind: input, shape index: {}]
  %s7 = inlined_call_operand.vmem [shape: f32[8,128], index: 7, kind: output, shape index: {}]
  %s8 = sld [smem:[#allocation0]]
  $region38: #{forward.7} parent=0
    _
  %s10 = ssub.s32 1, %s8
  %s11 = scalar_select 0, %s10, %s8
  // Predicated region
  $region2: #{forward.7} parent=0 // pred_check
    _
  $region3: #{forward.7} parent=0 // pred_check_branch
    %13 = sbr.rel (0) target = $region5
  $region4: #{forward.7} parent=0 // pred_region
    _
  $region5: #{forward.7} parent=0 // pred_fallthru
    _
  // Predicated region
  $region6: #{forward.7} parent=0 // pred_check
    _
  $region7: #{forward.7} parent=0 // pred_check_branch
    %15 = sbr.rel (0) target = $region9
  $region8: #{forward.7} parent=0 // pred_region
    _
  $region9: #{forward.7} parent=0 // pred_fallthru
    _
  // Predicated region
  $region10: #{forward.7} parent=0 // pred_check
    _
  $region11: #{forward.7} parent=0 // pred_check_branch
    %17 = sbr.rel (0) target = $region13
  $region12: #{forward.7} parent=0 // pred_region
    _
  $region13: #{forward.7} parent=0 // pred_fallthru
    _
  // Predicated region
  $region14: #{forward.7} parent=0 // pred_check
    _
  $region15: #{forward.7} parent=0 // pred_check_branch
    %19 = sbr.rel (0) target = $region17
  $region16: #{forward.7} parent=0 // pred_region
    _
  $region17: #{forward.7} parent=0 // pred_fallthru
    _
  // Predicated region
  $region18: #{forward.7} parent=0 // pred_check
    _
  $region19: #{forward.7} parent=0 // pred_check_branch
    %21 = sbr.rel (0) target = $region21
  $region20: #{forward.7} parent=0 // pred_region
    _
  $region21: #{forward.7} parent=0 // pred_fallthru
    _
  // Predicated region
  $region22: #{forward.7} parent=0 // pred_check
    _
  $region23: #{forward.7} parent=0 // pred_check_branch
    %23 = sbr.rel (0) target = $region25
  $region24: #{forward.7} parent=0 // pred_region
    _
  $region25: #{forward.7} parent=0 // pred_fallthru
    _
  // Predicated region
  $region26: #{forward.7} parent=0 // pred_check
    _
  $region27: #{forward.7} parent=0 // pred_check_branch
    %25 = sbr.rel (0) target = $region29
  $region28: #{forward.7} parent=0 // pred_region
    _
  $region29: #{forward.7} parent=0 // pred_fallthru
    _
  %v26 = vld [vmem:[%s0] sm:$0xff]
  %v27 = vld [vmem:[%s1] sm:$0xff]
  %v28 = vld [vmem:[%s1 + $0x8] sm:$0xff]
  %v29 = vld [vmem:[%s1 + $0x10] sm:$0xff]
  %v30 = vld [vmem:[%s1 + $0x18] sm:$0xff]
  %v31 = vld [vmem:[%s1 + $0x20] sm:$0xff]
  %v32 = vld [vmem:[%s1 + $0x28] sm:$0xff]
  %v33 = vld [vmem:[%s1 + $0x30] sm:$0xff]
  %v34 = vld [vmem:[%s1 + $0x38] sm:$0xff]
  %v35 = vld [vmem:[%s1 + $0x40] sm:$0xff]
  %v36 = vld [vmem:[%s1 + $0x48] sm:$0xff]
  %v37 = vld [vmem:[%s1 + $0x50] sm:$0xff]
  %v38 = vld [vmem:[%s1 + $0x58] sm:$0xff]
  %v39 = vld [vmem:[%s1 + $0x60] sm:$0xff]
  %v40 = vld [vmem:[%s1 + $0x68] sm:$0xff]
  %v41 = vld [vmem:[%s1 + $0x70] sm:$0xff]
  %v42 = vld [vmem:[%s1 + $0x78] sm:$0xff]
  %v43 = vld [vmem:[%s2] sm:$0x1]
  %v45 = vlaneseq
  %v46 = vshrl.u32 %v45, 7
  %v47 = vsub.s32 0, %v46
  %v48 = vrot.slane %v43, %v47
  %50 = vmatprep.subr.mxu0 0.0
  %51 = vmatpush1.msra.mxu0 %v42
  %52 = vmatprep.subr.mxu0 0.0
  %53 = vmatpush1.msra.mxu0 %v41
  %54 = vmatprep.subr.mxu0 0.0
  %55 = vmatpush1.msra.mxu0 %v40
  %56 = vmatprep.subr.mxu0 0.0
  %57 = vmatpush1.msra.mxu0 %v39
  %58 = vmatprep.subr.mxu0 0.0
  %59 = vmatpush1.msra.mxu0 %v38
  %60 = vmatprep.subr.mxu0 0.0
  %61 = vmatpush1.msra.mxu0 %v37
  %62 = vmatprep.subr.mxu0 0.0
  %63 = vmatpush1.msra.mxu0 %v36
  %64 = vmatprep.subr.mxu0 0.0
  %65 = vmatpush1.msra.mxu0 %v35
  %66 = vmatprep.subr.mxu0 0.0
  %67 = vmatpush1.msra.mxu0 %v34
  %68 = vmatprep.subr.mxu0 0.0
  %69 = vmatpush1.msra.mxu0 %v33
  %70 = vmatprep.subr.mxu0 0.0
  %71 = vmatpush1.msra.mxu0 %v32
  %72 = vmatprep.subr.mxu0 0.0
  %73 = vmatpush1.msra.mxu0 %v31
  %74 = vmatprep.subr.mxu0 0.0
  %75 = vmatpush1.msra.mxu0 %v30
  %76 = vmatprep.subr.mxu0 0.0
  %77 = vmatpush1.msra.mxu0 %v29
  %78 = vmatprep.subr.mxu0 0.0
  %79 = vmatpush1.msra.mxu0 %v28
  %80 = vmatprep.subr.mxu0 0.0
  %81 = vmatpush1.msra.mxu0 %v27
  %82 = vmatprep.subr.mxu0 0.0
  %83 = vmatpush2.msra.mxu0 0.0
  %84 = vmatprep.subr.mxu0 0.0
  %85 = vmatpush2.msra.mxu0 0.0
  %86 = vmatprep.subr.mxu0 0.0
  %87 = vmatpush2.msra.mxu0 0.0
  %88 = vmatprep.subr.mxu0 0.0
  %89 = vmatpush2.msra.mxu0 0.0
  %90 = vmatprep.subr.mxu0 0.0
  %91 = vmatpush2.msra.mxu0 0.0
  %92 = vmatprep.subr.mxu0 0.0
  %93 = vmatpush2.msra.mxu0 0.0
  %94 = vmatprep.subr.mxu0 0.0
  %95 = vmatpush2.msra.mxu0 0.0
  %96 = vmatprep.subr.mxu0 0.0
  %97 = vmatpush2.msra.mxu0 0.0
  %98 = vmatprep.subr.mxu0 0.0
  %99 = vmatpush2.msra.mxu0 0.0
  %100 = vmatprep.subr.mxu0 0.0
  %101 = vmatpush2.msra.mxu0 0.0
  %102 = vmatprep.subr.mxu0 0.0
  %103 = vmatpush2.msra.mxu0 0.0
  %104 = vmatprep.subr.mxu0 0.0
  %105 = vmatpush2.msra.mxu0 0.0
  %106 = vmatprep.subr.mxu0 0.0
  %107 = vmatpush2.msra.mxu0 0.0
  %108 = vmatprep.subr.mxu0 0.0
  %109 = vmatpush2.msra.mxu0 0.0
  %110 = vmatprep.subr.mxu0 0.0
  %111 = vmatpush2.msra.mxu0 0.0
  %112 = vmatprep.subr.mxu0 0.0
  %113 = vmatpush2.msra.mxu0 0.0
  %114 = vmatprep.mubr.f32.mxu0 0.0
  %115 = vmatmul.mubr.f32.gmra.mxu0 %v26
  %v116 = vpop.f32.mrf.mxu0
  %v117 = vadd.f32 %v48, %v116
  %v118 = vpop.f32.mrf.mxu0
  %119 = vdwg.mxu0
  %v120 = vmax.f32 %v117, 0.0
  %v121 = vld [vmem:[%s3] sm:$0xff]
  %v122 = vld [vmem:[%s3 + $0x8] sm:$0xff]
  %v123 = vld [vmem:[%s3 + $0x10] sm:$0xff]
  %v124 = vld [vmem:[%s3 + $0x18] sm:$0xff]
  %v125 = vld [vmem:[%s3 + $0x20] sm:$0xff]
  %v126 = vld [vmem:[%s3 + $0x28] sm:$0xff]
  %v127 = vld [vmem:[%s3 + $0x30] sm:$0xff]
  %v128 = vld [vmem:[%s3 + $0x38] sm:$0xff]
  %v129 = vld [vmem:[%s3 + $0x40] sm:$0xff]
  %v130 = vld [vmem:[%s3 + $0x48] sm:$0xff]
  %v131 = vld [vmem:[%s3 + $0x50] sm:$0xff]
  %v132 = vld [vmem:[%s3 + $0x58] sm:$0xff]
  %v133 = vld [vmem:[%s3 + $0x60] sm:$0xff]
  %v134 = vld [vmem:[%s3 + $0x68] sm:$0xff]
  %v135 = vld [vmem:[%s3 + $0x70] sm:$0xff]
  %v136 = vld [vmem:[%s3 + $0x78] sm:$0xff]
  %v137 = vld [vmem:[%s4] sm:$0x1]
  %v139 = vlaneseq
  %v140 = vshrl.u32 %v139, 7
  %v141 = vsub.s32 0, %v140
  %v142 = vrot.slane %v137, %v141
  %144 = vmatprep.subr.mxu0 0.0
  %145 = vmatpush1.msra.mxu0 %v136
  %146 = vmatprep.subr.mxu0 0.0
  %147 = vmatpush1.msra.mxu0 %v135
  %148 = vmatprep.subr.mxu0 0.0
  %149 = vmatpush1.msra.mxu0 %v134
  %150 = vmatprep.subr.mxu0 0.0
  %151 = vmatpush1.msra.mxu0 %v133
  %152 = vmatprep.subr.mxu0 0.0
  %153 = vmatpush1.msra.mxu0 %v132
  %154 = vmatprep.subr.mxu0 0.0
  %155 = vmatpush1.msra.mxu0 %v131
  %156 = vmatprep.subr.mxu0 0.0
  %157 = vmatpush1.msra.mxu0 %v130
  %158 = vmatprep.subr.mxu0 0.0
  %159 = vmatpush1.msra.mxu0 %v129
  %160 = vmatprep.subr.mxu0 0.0
  %161 = vmatpush1.msra.mxu0 %v128
  %162 = vmatprep.subr.mxu0 0.0
  %163 = vmatpush1.msra.mxu0 %v127
  %164 = vmatprep.subr.mxu0 0.0
  %165 = vmatpush1.msra.mxu0 %v126
  %166 = vmatprep.subr.mxu0 0.0
  %167 = vmatpush1.msra.mxu0 %v125
  %168 = vmatprep.subr.mxu0 0.0
  %169 = vmatpush1.msra.mxu0 %v124
  %170 = vmatprep.subr.mxu0 0.0
  %171 = vmatpush1.msra.mxu0 %v123
  %172 = vmatprep.subr.mxu0 0.0
  %173 = vmatpush1.msra.mxu0 %v122
  %174 = vmatprep.subr.mxu0 0.0
  %175 = vmatpush1.msra.mxu0 %v121
  %176 = vmatprep.subr.mxu0 0.0
  %177 = vmatpush2.msra.mxu0 0.0
  %178 = vmatprep.subr.mxu0 0.0
  %179 = vmatpush2.msra.mxu0 0.0
  %180 = vmatprep.subr.mxu0 0.0
  %181 = vmatpush2.msra.mxu0 0.0
  %182 = vmatprep.subr.mxu0 0.0
  %183 = vmatpush2.msra.mxu0 0.0
  %184 = vmatprep.subr.mxu0 0.0
  %185 = vmatpush2.msra.mxu0 0.0
  %186 = vmatprep.subr.mxu0 0.0
  %187 = vmatpush2.msra.mxu0 0.0
  %188 = vmatprep.subr.mxu0 0.0
  %189 = vmatpush2.msra.mxu0 0.0
  %190 = vmatprep.subr.mxu0 0.0
  %191 = vmatpush2.msra.mxu0 0.0
  %192 = vmatprep.subr.mxu0 0.0
  %193 = vmatpush2.msra.mxu0 0.0
  %194 = vmatprep.subr.mxu0 0.0
  %195 = vmatpush2.msra.mxu0 0.0
  %196 = vmatprep.subr.mxu0 0.0
  %197 = vmatpush2.msra.mxu0 0.0
  %198 = vmatprep.subr.mxu0 0.0
  %199 = vmatpush2.msra.mxu0 0.0
  %200 = vmatprep.subr.mxu0 0.0
  %201 = vmatpush2.msra.mxu0 0.0
  %202 = vmatprep.subr.mxu0 0.0
  %203 = vmatpush2.msra.mxu0 0.0
  %204 = vmatprep.subr.mxu0 0.0
  %205 = vmatpush2.msra.mxu0 0.0
  %206 = vmatprep.subr.mxu0 0.0
  %207 = vmatpush2.msra.mxu0 0.0
  %208 = vmatprep.mubr.f32.mxu0 0.0
  %209 = vmatmul.mubr.f32.gmra.mxu0 %v120
  %v210 = vpop.f32.mrf.mxu0
  %v211 = vadd.f32 %v142, %v210
  %v212 = vpop.f32.mrf.mxu0
  %213 = vdwg.mxu0
  %v214 = vmax.f32 %v211, 0.0
  %v215 = vld [vmem:[%s5] sm:$0xff]
  %v216 = vld [vmem:[%s5 + $0x8] sm:$0xff]
  %v217 = vld [vmem:[%s5 + $0x10] sm:$0xff]
  %v218 = vld [vmem:[%s5 + $0x18] sm:$0xff]
  %v219 = vld [vmem:[%s5 + $0x20] sm:$0xff]
  %v220 = vld [vmem:[%s5 + $0x28] sm:$0xff]
  %v221 = vld [vmem:[%s5 + $0x30] sm:$0xff]
  %v222 = vld [vmem:[%s5 + $0x38] sm:$0xff]
  %v223 = vld [vmem:[%s6] sm:$0x1]
  %v225 = vlaneseq
  %v226 = vshrl.u32 %v225, 7
  %v227 = vsub.s32 0, %v226
  %v228 = vrot.slane %v223, %v227
  %vm230 = vcmask 523264
  %v232 = vsel %vm230, %v214, 0
  %234 = vmatprep.subr.mxu0 0.0
  %235 = vmatpush1.msra.mxu0 0.0
  %236 = vmatprep.subr.mxu0 0.0
  %237 = vmatpush1.msra.mxu0 0.0
  %238 = vmatprep.subr.mxu0 0.0
  %239 = vmatpush1.msra.mxu0 0.0
  %240 = vmatprep.subr.mxu0 0.0
  %241 = vmatpush1.msra.mxu0 0.0
  %242 = vmatprep.subr.mxu0 0.0
  %243 = vmatpush1.msra.mxu0 0.0
  %244 = vmatprep.subr.mxu0 0.0
  %245 = vmatpush1.msra.mxu0 0.0
  %246 = vmatprep.subr.mxu0 0.0
  %247 = vmatpush1.msra.mxu0 0.0
  %248 = vmatprep.subr.mxu0 0.0
  %249 = vmatpush1.msra.mxu0 0.0
  %250 = vmatprep.subr.mxu0 0.0
  %251 = vmatpush1.msra.mxu0 %v222
  %252 = vmatprep.subr.mxu0 0.0
  %253 = vmatpush1.msra.mxu0 %v221
  %254 = vmatprep.subr.mxu0 0.0
  %255 = vmatpush1.msra.mxu0 %v220
  %256 = vmatprep.subr.mxu0 0.0
  %257 = vmatpush1.msra.mxu0 %v219
  %258 = vmatprep.subr.mxu0 0.0
  %259 = vmatpush1.msra.mxu0 %v218
  %260 = vmatprep.subr.mxu0 0.0
  %261 = vmatpush1.msra.mxu0 %v217
  %262 = vmatprep.subr.mxu0 0.0
  %263 = vmatpush1.msra.mxu0 %v216
  %264 = vmatprep.subr.mxu0 0.0
  %265 = vmatpush1.msra.mxu0 %v215
  %266 = vmatprep.subr.mxu0 0.0
  %267 = vmatpush2.msra.mxu0 0.0
  %268 = vmatprep.subr.mxu0 0.0
  %269 = vmatpush2.msra.mxu0 0.0
  %270 = vmatprep.subr.mxu0 0.0
  %271 = vmatpush2.msra.mxu0 0.0
  %272 = vmatprep.subr.mxu0 0.0
  %273 = vmatpush2.msra.mxu0 0.0
  %274 = vmatprep.subr.mxu0 0.0
  %275 = vmatpush2.msra.mxu0 0.0
  %276 = vmatprep.subr.mxu0 0.0
  %277 = vmatpush2.msra.mxu0 0.0
  %278 = vmatprep.subr.mxu0 0.0
  %279 = vmatpush2.msra.mxu0 0.0
  %280 = vmatprep.subr.mxu0 0.0
  %281 = vmatpush2.msra.mxu0 0.0
  %282 = vmatprep.subr.mxu0 0.0
  %283 = vmatpush2.msra.mxu0 0.0
  %284 = vmatprep.subr.mxu0 0.0
  %285 = vmatpush2.msra.mxu0 0.0
  %286 = vmatprep.subr.mxu0 0.0
  %287 = vmatpush2.msra.mxu0 0.0
  %288 = vmatprep.subr.mxu0 0.0
  %289 = vmatpush2.msra.mxu0 0.0
  %290 = vmatprep.subr.mxu0 0.0
  %291 = vmatpush2.msra.mxu0 0.0
  %292 = vmatprep.subr.mxu0 0.0
  %293 = vmatpush2.msra.mxu0 0.0
  %294 = vmatprep.subr.mxu0 0.0
  %295 = vmatpush2.msra.mxu0 0.0
  %296 = vmatprep.subr.mxu0 0.0
  %297 = vmatpush2.msra.mxu0 0.0
  %298 = vmatprep.mubr.f32.mxu0 0.0
  %299 = vmatmul.mubr.f32.gmra.mxu0 %v232
  %v300 = vpop.f32.mrf.mxu0
  %v301 = vadd.f32 %v228, %v300
  %v302 = vpop.f32.mrf.mxu0
  %303 = vdwg.mxu0
  %304 = vst [vmem:[%s7] sm:$0xff] %v301
  // Predicated region
  $region30: #{forward.7} parent=0 // pred_check
    _
  $region31: #{forward.7} parent=0 // pred_check_branch
    %306 = sbr.rel (0) target = $region33
  $region32: #{forward.7} parent=0 // pred_region
    _
  $region33: #{forward.7} parent=0 // pred_fallthru
    _
  // Predicated region
  $region34: #{forward.7} parent=0 // pred_check
    _
  $region35: #{forward.7} parent=0 // pred_check_branch
    %308 = sbr.rel (0) target = $region37
  $region36: #{forward.7} parent=0 // pred_region
    _
  $region37: #{forward.7} parent=0 // pred_fallthru
    _

// kernel: forward.4
$region0: #{forward.4}
  #allocation0 [shape = 'u32[]', space=smem, size = 0x4, offset = 0x4, fixed_abs, tag = 'smem constant byte address 0x4 - core index']
  #allocation1 [shape = 'u32[144,128]{1,0:T(1,128)}', space=vmem, size = 0x12000, scoped, tag = 'internal scratch']
  %s0 = inlined_call_operand.vmem [shape: bf16[256,256], index: 0, kind: input, shape index: {}]
  %s1 = inlined_call_operand.vmem [shape: bf16[256,128], index: 1, kind: input, shape index: {}]
  %s2 = inlined_call_operand.vmem [shape: f32[256,1], index: 2, kind: input, shape index: {}]
  %s3 = inlined_call_operand.vmem [shape: bf16[128,128], index: 3, kind: input, shape index: {}]
  %s4 = inlined_call_operand.vmem [shape: bf16[128,128], index: 4, kind: input, shape index: {}]
  %s5 = inlined_call_operand.vmem [shape: f32[1,128], index: 5, kind: input, shape index: {}]
  %s6 = inlined_call_operand.vmem [shape: f32[8,128], index: 6, kind: input, shape index: {}]
  %s7 = inlined_call_operand.vmem [shape: bf16[256,128], index: 7, kind: output, shape index: {0}]
  %s8 = inlined_call_operand.vmem [shape: f32[8,256], index: 8, kind: output, shape index: {1}]
  %9 = xla_tuple %s7, %s8
  %s10 = sld [smem:[#allocation0]]
  $region46: #{forward.4} parent=0
    _
  %s12 = ssub.s32 1, %s10
  %s13 = scalar_select 0, %s12, %s10
  // Predicated region
  $region2: #{forward.4} parent=0 // pred_check
    _
  $region3: #{forward.4} parent=0 // pred_check_branch
    %15 = sbr.rel (0) target = $region5
  $region4: #{forward.4} parent=0 // pred_region
    _
  $region5: #{forward.4} parent=0 // pred_fallthru
    _
  // Predicated region
  $region6: #{forward.4} parent=0 // pred_check
    _
  $region7: #{forward.4} parent=0 // pred_check_branch
    %17 = sbr.rel (0) target = $region9
  $region8: #{forward.4} parent=0 // pred_region
    _
  $region9: #{forward.4} parent=0 // pred_fallthru
    _
  // Predicated region
  $region10: #{forward.4} parent=0 // pred_check
    _
  $region11: #{forward.4} parent=0 // pred_check_branch
    %19 = sbr.rel (0) target = $region13
  $region12: #{forward.4} parent=0 // pred_region
    _
  $region13: #{forward.4} parent=0 // pred_fallthru
    _
  // Predicated region
  $region14: #{forward.4} parent=0 // pred_check
    _
  $region15: #{forward.4} parent=0 // pred_check_branch
    %21 = sbr.rel (0) target = $region17
  $region16: #{forward.4} parent=0 // pred_region
    _
  $region17: #{forward.4} parent=0 // pred_fallthru
    _
  // Predicated region
  $region18: #{forward.4} parent=0 // pred_check
    _
  $region19: #{forward.4} parent=0 // pred_check_branch
    %23 = sbr.rel (0) target = $region21
  $region20: #{forward.4} parent=0 // pred_region
    _
  $region21: #{forward.4} parent=0 // pred_fallthru
    _
  // Predicated region
  $region22: #{forward.4} parent=0 // pred_check
    _
  $region23: #{forward.4} parent=0 // pred_check_branch
    %25 = sbr.rel (0) target = $region25
  $region24: #{forward.4} parent=0 // pred_region
    _
  $region25: #{forward.4} parent=0 // pred_fallthru
    _
  // Predicated region
  $region26: #{forward.4} parent=0 // pred_check
    _
  $region27: #{forward.4} parent=0 // pred_check_branch
    %27 = sbr.rel (0) target = $region29
  $region28: #{forward.4} parent=0 // pred_region
    _
  $region29: #{forward.4} parent=0 // pred_fallthru
    _
  %s29 = smul.u32 0, 256
  %v30 = vld [vmem:[%s0] sm:$0xff]
  %v31 = vld [vmem:[%s0 + $0x8] sm:$0xff]
  %v32 = vld [vmem:[%s0 + $0x10] sm:$0xff]
  %v33 = vld [vmem:[%s0 + $0x18] sm:$0xff]
  %v34 = vld [vmem:[%s0 + $0x20] sm:$0xff]
  %v35 = vld [vmem:[%s0 + $0x28] sm:$0xff]
  %v36 = vld [vmem:[%s0 + $0x30] sm:$0xff]
  %v37 = vld [vmem:[%s0 + $0x38] sm:$0xff]
  %v38 = vld [vmem:[%s0 + $0x40] sm:$0xff]
  %v39 = vld [vmem:[%s0 + $0x48] sm:$0xff]
  %v40 = vld [vmem:[%s0 + $0x50] sm:$0xff]
  %v41 = vld [vmem:[%s0 + $0x58] sm:$0xff]
  %v42 = vld [vmem:[%s0 + $0x60] sm:$0xff]
  %v43 = vld [vmem:[%s0 + $0x68] sm:$0xff]
  %v44 = vld [vmem:[%s0 + $0x70] sm:$0xff]
  %v45 = vld [vmem:[%s0 + $0x78] sm:$0xff]
  %v46 = vld [vmem:[%s0 + $0x80] sm:$0xff]
  %v47 = vld [vmem:[%s0 + $0x88] sm:$0xff]
  %v48 = vld [vmem:[%s0 + $0x90] sm:$0xff]
  %v49 = vld [vmem:[%s0 + $0x98] sm:$0xff]
  %v50 = vld [vmem:[%s0 + $0xa0] sm:$0xff]
  %v51 = vld [vmem:[%s0 + $0xa8] sm:$0xff]
  %v52 = vld [vmem:[%s0 + $0xb0] sm:$0xff]
  %v53 = vld [vmem:[%s0 + $0xb8] sm:$0xff]
  %v54 = vld [vmem:[%s0 + $0xc0] sm:$0xff]
  %v55 = vld [vmem:[%s0 + $0xc8] sm:$0xff]
  %v56 = vld [vmem:[%s0 + $0xd0] sm:$0xff]
  %v57 = vld [vmem:[%s0 + $0xd8] sm:$0xff]
  %v58 = vld [vmem:[%s0 + $0xe0] sm:$0xff]
  %v59 = vld [vmem:[%s0 + $0xe8] sm:$0xff]
  %v60 = vld [vmem:[%s0 + $0xf0] sm:$0xff]
  %v61 = vld [vmem:[%s0 + $0xf8] sm:$0xff]
  %v62 = vld [vmem:[%s1] sm:$0xf]
  %v63 = vld [vmem:[%s1 + $0x4] sm:$0xf]
  %v64 = vld [vmem:[%s1 + $0x8] sm:$0xf]
  %v65 = vld [vmem:[%s1 + $0xc] sm:$0xf]
  %v66 = vld [vmem:[%s1 + $0x10] sm:$0xf]
  %v67 = vld [vmem:[%s1 + $0x14] sm:$0xf]
  %v68 = vld [vmem:[%s1 + $0x18] sm:$0xf]
  %v69 = vld [vmem:[%s1 + $0x1c] sm:$0xf]
  %v70 = vld [vmem:[%s1 + $0x20] sm:$0xf]
  %v71 = vld [vmem:[%s1 + $0x24] sm:$0xf]
  %v72 = vld [vmem:[%s1 + $0x28] sm:$0xf]
  %v73 = vld [vmem:[%s1 + $0x2c] sm:$0xf]
  %v74 = vld [vmem:[%s1 + $0x30] sm:$0xf]
  %v75 = vld [vmem:[%s1 + $0x34] sm:$0xf]
  %v76 = vld [vmem:[%s1 + $0x38] sm:$0xf]
  %v77 = vld [vmem:[%s1 + $0x3c] sm:$0xf]
  %v78 = vld [vmem:[%s1 + $0x40] sm:$0xf]
  %v79 = vld [vmem:[%s1 + $0x44] sm:$0xf]
  %v80 = vld [vmem:[%s1 + $0x48] sm:$0xf]
  %v81 = vld [vmem:[%s1 + $0x4c] sm:$0xf]
  %v82 = vld [vmem:[%s1 + $0x50] sm:$0xf]
  %v83 = vld [vmem:[%s1 + $0x54] sm:$0xf]
  %v84 = vld [vmem:[%s1 + $0x58] sm:$0xf]
  %v85 = vld [vmem:[%s1 + $0x5c] sm:$0xf]
  %v86 = vld [vmem:[%s1 + $0x60] sm:$0xf]
  %v87 = vld [vmem:[%s1 + $0x64] sm:$0xf]
  %v88 = vld [vmem:[%s1 + $0x68] sm:$0xf]
  %v89 = vld [vmem:[%s1 + $0x6c] sm:$0xf]
  %v90 = vld [vmem:[%s1 + $0x70] sm:$0xf]
  %v91 = vld [vmem:[%s1 + $0x74] sm:$0xf]
  %v92 = vld [vmem:[%s1 + $0x78] sm:$0xf]
  %v93 = vld [vmem:[%s1 + $0x7c] sm:$0xf]
  %v126 = vunpack.c.l.b16 %v30
  %v127 = vunpack.c.h.b16 %v30
  %v128 = vunpack.c.l.b16 %v31
  %v129 = vunpack.c.h.b16 %v31
  %v130 = vunpack.c.l.b16 %v32
  %v131 = vunpack.c.h.b16 %v32
  %v132 = vunpack.c.l.b16 %v33
  %v133 = vunpack.c.h.b16 %v33
  %v134 = vunpack.c.l.b16 %v34
  %v135 = vunpack.c.h.b16 %v34
  %v136 = vunpack.c.l.b16 %v35
  %v137 = vunpack.c.h.b16 %v35
  %v138 = vunpack.c.l.b16 %v36
  %v139 = vunpack.c.h.b16 %v36
  %v140 = vunpack.c.l.b16 %v37
  %v141 = vunpack.c.h.b16 %v37
  %v142 = vunpack.c.l.b16 %v38
  %v143 = vunpack.c.h.b16 %v38
  %v144 = vunpack.c.l.b16 %v39
  %v145 = vunpack.c.h.b16 %v39
  %v146 = vunpack.c.l.b16 %v40
  %v147 = vunpack.c.h.b16 %v40
  %v148 = vunpack.c.l.b16 %v41
  %v149 = vunpack.c.h.b16 %v41
  %v150 = vunpack.c.l.b16 %v42
  %v151 = vunpack.c.h.b16 %v42
  %v152 = vunpack.c.l.b16 %v43
  %v153 = vunpack.c.h.b16 %v43
  %v154 = vunpack.c.l.b16 %v44
  %v155 = vunpack.c.h.b16 %v44
  %v156 = vunpack.c.l.b16 %v45
  %v157 = vunpack.c.h.b16 %v45
  %v158 = vunpack.c.l.b16 %v46
  %v159 = vunpack.c.h.b16 %v46
  %v160 = vunpack.c.l.b16 %v47
  %v161 = vunpack.c.h.b16 %v47
  %v162 = vunpack.c.l.b16 %v48
  %v163 = vunpack.c.h.b16 %v48
  %v164 = vunpack.c.l.b16 %v49
  %v165 = vunpack.c.h.b16 %v49
  %v166 = vunpack.c.l.b16 %v50
  %v167 = vunpack.c.h.b16 %v50
  %v168 = vunpack.c.l.b16 %v51
  %v169 = vunpack.c.h.b16 %v51
  %v170 = vunpack.c.l.b16 %v52
  %v171 = vunpack.c.h.b16 %v52
  %v172 = vunpack.c.l.b16 %v53
  %v173 = vunpack.c.h.b16 %v53
  %v174 = vunpack.c.l.b16 %v54
  %v175 = vunpack.c.h.b16 %v54
  %v176 = vunpack.c.l.b16 %v55
  %v177 = vunpack.c.h.b16 %v55
  %v178 = vunpack.c.l.b16 %v56
  %v179 = vunpack.c.h.b16 %v56
  %v180 = vunpack.c.l.b16 %v57
  %v181 = vunpack.c.h.b16 %v57
  %v182 = vunpack.c.l.b16 %v58
  %v183 = vunpack.c.h.b16 %v58
  %v184 = vunpack.c.l.b16 %v59
  %v185 = vunpack.c.h.b16 %v59
  %v186 = vunpack.c.l.b16 %v60
  %v187 = vunpack.c.h.b16 %v60
  %v188 = vunpack.c.l.b16 %v61
  %v189 = vunpack.c.h.b16 %v61
  %v190 = vpack.c.b16 %v128, %v126
  %v191 = vpack.c.b16 %v129, %v127
  %v192 = vpack.c.b16 %v132, %v130
  %v193 = vpack.c.b16 %v133, %v131
  %v194 = vpack.c.b16 %v136, %v134
  %v195 = vpack.c.b16 %v137, %v135
  %v196 = vpack.c.b16 %v140, %v138
  %v197 = vpack.c.b16 %v141, %v139
  %v198 = vpack.c.b16 %v144, %v142
  %v199 = vpack.c.b16 %v145, %v143
  %v200 = vpack.c.b16 %v148, %v146
  %v201 = vpack.c.b16 %v149, %v147
  %v202 = vpack.c.b16 %v152, %v150
  %v203 = vpack.c.b16 %v153, %v151
  %v204 = vpack.c.b16 %v156, %v154
  %v205 = vpack.c.b16 %v157, %v155
  %v206 = vpack.c.b16 %v160, %v158
  %v207 = vpack.c.b16 %v161, %v159
  %v208 = vpack.c.b16 %v164, %v162
  %v209 = vpack.c.b16 %v165, %v163
  %v210 = vpack.c.b16 %v168, %v166
  %v211 = vpack.c.b16 %v169, %v167
  %v212 = vpack.c.b16 %v172, %v170
  %v213 = vpack.c.b16 %v173, %v171
  %v214 = vpack.c.b16 %v176, %v174
  %v215 = vpack.c.b16 %v177, %v175
  %v216 = vpack.c.b16 %v180, %v178
  %v217 = vpack.c.b16 %v181, %v179
  %v218 = vpack.c.b16 %v184, %v182
  %v219 = vpack.c.b16 %v185, %v183
  %v220 = vpack.c.b16 %v188, %v186
  %v221 = vpack.c.b16 %v189, %v187
  %v286 = vunpack.c.l.b16 %v62
  %v287 = vunpack.c.l.b16 %v63
  %v288 = vunpack.c.l.b16 %v64
  %v289 = vunpack.c.l.b16 %v65
  %v290 = vunpack.c.l.b16 %v66
  %v291 = vunpack.c.l.b16 %v67
  %v292 = vunpack.c.l.b16 %v68
  %v293 = vunpack.c.l.b16 %v69
  %v294 = vunpack.c.l.b16 %v70
  %v295 = vunpack.c.l.b16 %v71
  %v296 = vunpack.c.l.b16 %v72
  %v297 = vunpack.c.l.b16 %v73
  %v298 = vunpack.c.l.b16 %v74
  %v299 = vunpack.c.l.b16 %v75
  %v300 = vunpack.c.l.b16 %v76
  %v301 = vunpack.c.l.b16 %v77
  %v302 = vunpack.c.l.b16 %v78
  %v303 = vunpack.c.l.b16 %v79
  %v304 = vunpack.c.l.b16 %v80
  %v305 = vunpack.c.l.b16 %v81
  %v306 = vunpack.c.l.b16 %v82
  %v307 = vunpack.c.l.b16 %v83
  %v308 = vunpack.c.l.b16 %v84
  %v309 = vunpack.c.l.b16 %v85
  %v310 = vunpack.c.l.b16 %v86
  %v311 = vunpack.c.l.b16 %v87
  %v312 = vunpack.c.l.b16 %v88
  %v313 = vunpack.c.l.b16 %v89
  %v314 = vunpack.c.l.b16 %v90
  %v315 = vunpack.c.l.b16 %v91
  %v316 = vunpack.c.l.b16 %v92
  %v317 = vunpack.c.l.b16 %v93
  %v318 = vpack.c.b16 %v287, %v286
  %v319 = vpack.c.b16 %v289, %v288
  %v320 = vpack.c.b16 %v291, %v290
  %v321 = vpack.c.b16 %v293, %v292
  %v322 = vpack.c.b16 %v295, %v294
  %v323 = vpack.c.b16 %v297, %v296
  %v324 = vpack.c.b16 %v299, %v298
  %v325 = vpack.c.b16 %v301, %v300
  %v326 = vpack.c.b16 %v303, %v302
  %v327 = vpack.c.b16 %v305, %v304
  %v328 = vpack.c.b16 %v307, %v306
  %v329 = vpack.c.b16 %v309, %v308
  %v330 = vpack.c.b16 %v311, %v310
  %v331 = vpack.c.b16 %v313, %v312
  %v332 = vpack.c.b16 %v315, %v314
  %v333 = vpack.c.b16 %v317, %v316
  %350 = vmatprep.subr.bf16.mxu0 0
  %351 = vmatpush1.bf16.msra.mxu0 %v325
  %352 = vmatprep.subr.bf16.mxu0 0
  %353 = vmatpush1.bf16.msra.mxu0 %v324
  %354 = vmatprep.subr.bf16.mxu0 0
  %355 = vmatpush1.bf16.msra.mxu0 %v323
  %356 = vmatprep.subr.bf16.mxu0 0
  %357 = vmatpush1.bf16.msra.mxu0 %v322
  %358 = vmatprep.subr.bf16.mxu0 0
  %359 = vmatpush1.bf16.msra.mxu0 %v321
  %360 = vmatprep.subr.bf16.mxu0 0
  %361 = vmatpush1.bf16.msra.mxu0 %v320
  %362 = vmatprep.subr.bf16.mxu0 0
  %363 = vmatpush1.bf16.msra.mxu0 %v319
  %364 = vmatprep.subr.bf16.mxu0 0
  %365 = vmatpush1.bf16.msra.mxu0 %v318
  %366 = vmatprep.subr.bf16.mxu0 0
  %367 = vmatpush2.bf16.msra.mxu0 %v333
  %368 = vmatprep.subr.bf16.mxu0 0
  %369 = vmatpush2.bf16.msra.mxu0 %v332
  %370 = vmatprep.subr.bf16.mxu0 0
  %371 = vmatpush2.bf16.msra.mxu0 %v331
  %372 = vmatprep.subr.bf16.mxu0 0
  %373 = vmatpush2.bf16.msra.mxu0 %v330
  %374 = vmatprep.subr.bf16.mxu0 0
  %375 = vmatpush2.bf16.msra.mxu0 %v329
  %376 = vmatprep.subr.bf16.mxu0 0
  %377 = vmatpush2.bf16.msra.mxu0 %v328
  %378 = vmatprep.subr.bf16.mxu0 0
  %379 = vmatpush2.bf16.msra.mxu0 %v327
  %380 = vmatprep.subr.bf16.mxu0 0
  %381 = vmatpush2.bf16.msra.mxu0 %v326
  %382 = vmatprep.mubr.bf16.mxu0 %v191
  %383 = vmatmul.mubr.bf16.gmra.mxu0 %v190
  %v384 = vpop.f32.mrf.mxu0
  %v385 = vadd.f32 0.0, %v384
  %v386 = vpop.f32.mrf.mxu0
  %v387 = vpop.f32.mrf.mxu0
  %v388 = vadd.f32 0.0, %v387
  %v389 = vpop.f32.mrf.mxu0
  %390 = vmatprep.mubr.bf16.mxu0 %v193
  %391 = vmatmul.mubr.bf16.gmra.mxu0 %v192
  %v392 = vpop.f32.mrf.mxu0
  %v393 = vadd.f32 0.0, %v392
  %v394 = vpop.f32.mrf.mxu0
  %v395 = vpop.f32.mrf.mxu0
  %v396 = vadd.f32 0.0, %v395
  %v397 = vpop.f32.mrf.mxu0
  %398 = vmatprep.mubr.bf16.mxu0 %v195
  %399 = vmatmul.mubr.bf16.gmra.mxu0 %v194
  %v400 = vpop.f32.mrf.mxu0
  %v401 = vadd.f32 0.0, %v400
  %v402 = vpop.f32.mrf.mxu0
  %v403 = vpop.f32.mrf.mxu0
  %v404 = vadd.f32 0.0, %v403
  %v405 = vpop.f32.mrf.mxu0
  %406 = vmatprep.mubr.bf16.mxu0 %v197
  %407 = vmatmul.mubr.bf16.gmra.mxu0 %v196
  %v408 = vpop.f32.mrf.mxu0
  %v409 = vadd.f32 0.0, %v408
  %v410 = vpop.f32.mrf.mxu0
  %v411 = vpop.f32.mrf.mxu0
  %v412 = vadd.f32 0.0, %v411
  %v413 = vpop.f32.mrf.mxu0
  %414 = vmatprep.mubr.bf16.mxu0 %v199
  %415 = vmatmul.mubr.bf16.gmra.mxu0 %v198
  %v416 = vpop.f32.mrf.mxu0
  %v417 = vadd.f32 0.0, %v416
  %v418 = vpop.f32.mrf.mxu0
  %v419 = vpop.f32.mrf.mxu0
  %v420 = vadd.f32 0.0, %v419
  %v421 = vpop.f32.mrf.mxu0
  %422 = vmatprep.mubr.bf16.mxu0 %v201
  %423 = vmatmul.mubr.bf16.gmra.mxu0 %v200
  %v424 = vpop.f32.mrf.mxu0
  %v425 = vadd.f32 0.0, %v424
  %v426 = vpop.f32.mrf.mxu0
  %v427 = vpop.f32.mrf.mxu0
  %v428 = vadd.f32 0.0, %v427
  %v429 = vpop.f32.mrf.mxu0
  %430 = vmatprep.mubr.bf16.mxu0 %v203
  %431 = vmatmul.mubr.bf16.gmra.mxu0 %v202
  %v432 = vpop.f32.mrf.mxu0
  %v433 = vadd.f32 0.0, %v432
  %v434 = vpop.f32.mrf.mxu0
  %v435 = vpop.f32.mrf.mxu0
  %v436 = vadd.f32 0.0, %v435
  %v437 = vpop.f32.mrf.mxu0
  %438 = vmatprep.mubr.bf16.mxu0 %v205
  %439 = vmatmul.mubr.bf16.gmra.mxu0 %v204
  %v440 = vpop.f32.mrf.mxu0
  %v441 = vadd.f32 0.0, %v440
  %v442 = vpop.f32.mrf.mxu0
  %v443 = vpop.f32.mrf.mxu0
  %v444 = vadd.f32 0.0, %v443
  %v445 = vpop.f32.mrf.mxu0
  %446 = vmatprep.mubr.bf16.mxu0 %v207
  %447 = vmatmul.mubr.bf16.gmra.mxu0 %v206
  %v448 = vpop.f32.mrf.mxu0
  %v449 = vadd.f32 0.0, %v448
  %v450 = vpop.f32.mrf.mxu0
  %v451 = vpop.f32.mrf.mxu0
  %v452 = vadd.f32 0.0, %v451
  %v453 = vpop.f32.mrf.mxu0
  %454 = vmatprep.mubr.bf16.mxu0 %v209
  %455 = vmatmul.mubr.bf16.gmra.mxu0 %v208
  %v456 = vpop.f32.mrf.mxu0
  %v457 = vadd.f32 0.0, %v456
  %v458 = vpop.f32.mrf.mxu0
  %v459 = vpop.f32.mrf.mxu0
  %v460 = vadd.f32 0.0, %v459
  %v461 = vpop.f32.mrf.mxu0
  %462 = vmatprep.mubr.bf16.mxu0 %v211
  %463 = vmatmul.mubr.bf16.gmra.mxu0 %v210
  %v464 = vpop.f32.mrf.mxu0
  %v465 = vadd.f32 0.0, %v464
  %v466 = vpop.f32.mrf.mxu0
  %v467 = vpop.f32.mrf.mxu0
  %v468 = vadd.f32 0.0, %v467
  %v469 = vpop.f32.mrf.mxu0
  %470 = vmatprep.mubr.bf16.mxu0 %v213
  %471 = vmatmul.mubr.bf16.gmra.mxu0 %v212
  %v472 = vpop.f32.mrf.mxu0
  %v473 = vadd.f32 0.0, %v472
  %v474 = vpop.f32.mrf.mxu0
  %v475 = vpop.f32.mrf.mxu0
  %v476 = vadd.f32 0.0, %v475
  %v477 = vpop.f32.mrf.mxu0
  %478 = vmatprep.mubr.bf16.mxu0 %v215
  %479 = vmatmul.mubr.bf16.gmra.mxu0 %v214
  %v480 = vpop.f32.mrf.mxu0
  %v481 = vadd.f32 0.0, %v480
  %v482 = vpop.f32.mrf.mxu0
  %v483 = vpop.f32.mrf.mxu0
  %v484 = vadd.f32 0.0, %v483
  %v485 = vpop.f32.mrf.mxu0
  %486 = vmatprep.mubr.bf16.mxu0 %v217
  %487 = vmatmul.mubr.bf16.gmra.mxu0 %v216
  %v488 = vpop.f32.mrf.mxu0
  %v489 = vadd.f32 0.0, %v488
  %v490 = vpop.f32.mrf.mxu0
  %v491 = vpop.f32.mrf.mxu0
  %v492 = vadd.f32 0.0, %v491
  %v493 = vpop.f32.mrf.mxu0
  %494 = vmatprep.mubr.bf16.mxu0 %v219
  %495 = vmatmul.mubr.bf16.gmra.mxu0 %v218
  %v496 = vpop.f32.mrf.mxu0
  %v497 = vadd.f32 0.0, %v496
  %v498 = vpop.f32.mrf.mxu0
  %v499 = vpop.f32.mrf.mxu0
  %v500 = vadd.f32 0.0, %v499
  %v501 = vpop.f32.mrf.mxu0
  %502 = vmatprep.mubr.bf16.mxu0 %v221
  %503 = vmatmul.mubr.bf16.gmra.mxu0 %v220
  %v504 = vpop.f32.mrf.mxu0
  %v505 = vadd.f32 0.0, %v504
  %v506 = vpop.f32.mrf.mxu0
  %v507 = vpop.f32.mrf.mxu0
  %v508 = vadd.f32 0.0, %v507
  %v509 = vpop.f32.mrf.mxu0
  %510 = vdwg.mxu0
  %v511 = vld [vmem:[%s2] sm:$0xff]
  %v512 = vld [vmem:[%s2 + $0x8] sm:$0xff]
  %v513 = vld [vmem:[%s2 + $0x10] sm:$0xff]
  %v514 = vld [vmem:[%s2 + $0x18] sm:$0xff]
  %v515 = vld [vmem:[%s2 + $0x20] sm:$0xff]
  %v516 = vld [vmem:[%s2 + $0x28] sm:$0xff]
  %v517 = vld [vmem:[%s2 + $0x30] sm:$0xff]
  %v518 = vld [vmem:[%s2 + $0x38] sm:$0xff]
  %v519 = vld [vmem:[%s2 + $0x40] sm:$0xff]
  %v520 = vld [vmem:[%s2 + $0x48] sm:$0xff]
  %v521 = vld [vmem:[%s2 + $0x50] sm:$0xff]
  %v522 = vld [vmem:[%s2 + $0x58] sm:$0xff]
  %v523 = vld [vmem:[%s2 + $0x60] sm:$0xff]
  %v524 = vld [vmem:[%s2 + $0x68] sm:$0xff]
  %v525 = vld [vmem:[%s2 + $0x70] sm:$0xff]
  %v526 = vld [vmem:[%s2 + $0x78] sm:$0xff]
  %v527 = vld [vmem:[%s2 + $0x80] sm:$0xff]
  %v528 = vld [vmem:[%s2 + $0x88] sm:$0xff]
  %v529 = vld [vmem:[%s2 + $0x90] sm:$0xff]
  %v530 = vld [vmem:[%s2 + $0x98] sm:$0xff]
  %v531 = vld [vmem:[%s2 + $0xa0] sm:$0xff]
  %v532 = vld [vmem:[%s2 + $0xa8] sm:$0xff]
  %v533 = vld [vmem:[%s2 + $0xb0] sm:$0xff]
  %v534 = vld [vmem:[%s2 + $0xb8] sm:$0xff]
  %v535 = vld [vmem:[%s2 + $0xc0] sm:$0xff]
  %v536 = vld [vmem:[%s2 + $0xc8] sm:$0xff]
  %v537 = vld [vmem:[%s2 + $0xd0] sm:$0xff]
  %v538 = vld [vmem:[%s2 + $0xd8] sm:$0xff]
  %v539 = vld [vmem:[%s2 + $0xe0] sm:$0xff]
  %v540 = vld [vmem:[%s2 + $0xe8] sm:$0xff]
  %v541 = vld [vmem:[%s2 + $0xf0] sm:$0xff]
  %v542 = vld [vmem:[%s2 + $0xf8] sm:$0xff]
  %544 = vset.pattern.permute.xlu0 0
  %545 = vperm.xlu0 %544, %v511
  %v546 = vpop.permute.xlu0 %545
  %549 = vset.pattern.permute.xlu0 0
  %550 = vperm.xlu0 %549, %v512
  %v551 = vpop.permute.xlu0 %550
  %554 = vset.pattern.permute.xlu0 0
  %555 = vperm.xlu0 %554, %v513
  %v556 = vpop.permute.xlu0 %555
  %559 = vset.pattern.permute.xlu0 0
  %560 = vperm.xlu0 %559, %v514
  %v561 = vpop.permute.xlu0 %560
  %564 = vset.pattern.permute.xlu0 0
  %565 = vperm.xlu0 %564, %v515
  %v566 = vpop.permute.xlu0 %565
  %569 = vset.pattern.permute.xlu0 0
  %570 = vperm.xlu0 %569, %v516
  %v571 = vpop.permute.xlu0 %570
  %574 = vset.pattern.permute.xlu0 0
  %575 = vperm.xlu0 %574, %v517
  %v576 = vpop.permute.xlu0 %575
  %579 = vset.pattern.permute.xlu0 0
  %580 = vperm.xlu0 %579, %v518
  %v581 = vpop.permute.xlu0 %580
  %584 = vset.pattern.permute.xlu0 0
  %585 = vperm.xlu0 %584, %v519
  %v586 = vpop.permute.xlu0 %585
  %589 = vset.pattern.permute.xlu0 0
  %590 = vperm.xlu0 %589, %v520
  %v591 = vpop.permute.xlu0 %590
  %594 = vset.pattern.permute.xlu0 0
  %595 = vperm.xlu0 %594, %v521
  %v596 = vpop.permute.xlu0 %595
  %599 = vset.pattern.permute.xlu0 0
  %600 = vperm.xlu0 %599, %v522
  %v601 = vpop.permute.xlu0 %600
  %604 = vset.pattern.permute.xlu0 0
  %605 = vperm.xlu0 %604, %v523
  %v606 = vpop.permute.xlu0 %605
  %609 = vset.pattern.permute.xlu0 0
  %610 = vperm.xlu0 %609, %v524
  %v611 = vpop.permute.xlu0 %610
  %614 = vset.pattern.permute.xlu0 0
  %615 = vperm.xlu0 %614, %v525
  %v616 = vpop.permute.xlu0 %615
  %619 = vset.pattern.permute.xlu0 0
  %620 = vperm.xlu0 %619, %v526
  %v621 = vpop.permute.xlu0 %620
  %624 = vset.pattern.permute.xlu0 0
  %625 = vperm.xlu0 %624, %v527
  %v626 = vpop.permute.xlu0 %625
  %629 = vset.pattern.permute.xlu0 0
  %630 = vperm.xlu0 %629, %v528
  %v631 = vpop.permute.xlu0 %630
  %634 = vset.pattern.permute.xlu0 0
  %635 = vperm.xlu0 %634, %v529
  %v636 = vpop.permute.xlu0 %635
  %639 = vset.pattern.permute.xlu0 0
  %640 = vperm.xlu0 %639, %v530
  %v641 = vpop.permute.xlu0 %640
  %644 = vset.pattern.permute.xlu0 0
  %645 = vperm.xlu0 %644, %v531
  %v646 = vpop.permute.xlu0 %645
  %649 = vset.pattern.permute.xlu0 0
  %650 = vperm.xlu0 %649, %v532
  %v651 = vpop.permute.xlu0 %650
  %654 = vset.pattern.permute.xlu0 0
  %655 = vperm.xlu0 %654, %v533
  %v656 = vpop.permute.xlu0 %655
  %659 = vset.pattern.permute.xlu0 0
  %660 = vperm.xlu0 %659, %v534
  %v661 = vpop.permute.xlu0 %660
  %664 = vset.pattern.permute.xlu0 0
  %665 = vperm.xlu0 %664, %v535
  %v666 = vpop.permute.xlu0 %665
  %669 = vset.pattern.permute.xlu0 0
  %670 = vperm.xlu0 %669, %v536
  %v671 = vpop.permute.xlu0 %670
  %674 = vset.pattern.permute.xlu0 0
  %675 = vperm.xlu0 %674, %v537
  %v676 = vpop.permute.xlu0 %675
  %679 = vset.pattern.permute.xlu0 0
  %680 = vperm.xlu0 %679, %v538
  %v681 = vpop.permute.xlu0 %680
  %684 = vset.pattern.permute.xlu0 0
  %685 = vperm.xlu0 %684, %v539
  %v686 = vpop.permute.xlu0 %685
  %689 = vset.pattern.permute.xlu0 0
  %690 = vperm.xlu0 %689, %v540
  %v691 = vpop.permute.xlu0 %690
  %694 = vset.pattern.permute.xlu0 0
  %695 = vperm.xlu0 %694, %v541
  %v696 = vpop.permute.xlu0 %695
  %699 = vset.pattern.permute.xlu0 0
  %700 = vperm.xlu0 %699, %v542
  %v701 = vpop.permute.xlu0 %700
  %v703 = vmul.f32 %v385, %v546
  %v704 = vmul.f32 %v388, %v551
  %v705 = vmul.f32 %v393, %v556
  %v706 = vmul.f32 %v396, %v561
  %v707 = vmul.f32 %v401, %v566
  %v708 = vmul.f32 %v404, %v571
  %v709 = vmul.f32 %v409, %v576
  %v710 = vmul.f32 %v412, %v581
  %v711 = vmul.f32 %v417, %v586
  %v712 = vmul.f32 %v420, %v591
  %v713 = vmul.f32 %v425, %v596
  %v714 = vmul.f32 %v428, %v601
  %v715 = vmul.f32 %v433, %v606
  %v716 = vmul.f32 %v436, %v611
  %v717 = vmul.f32 %v441, %v616
  %v718 = vmul.f32 %v444, %v621
  %v719 = vmul.f32 %v449, %v626
  %v720 = vmul.f32 %v452, %v631
  %v721 = vmul.f32 %v457, %v636
  %v722 = vmul.f32 %v460, %v641
  %v723 = vmul.f32 %v465, %v646
  %v724 = vmul.f32 %v468, %v651
  %v725 = vmul.f32 %v473, %v656
  %v726 = vmul.f32 %v476, %v661
  %v727 = vmul.f32 %v481, %v666
  %v728 = vmul.f32 %v484, %v671
  %v729 = vmul.f32 %v489, %v676
  %v730 = vmul.f32 %v492, %v681
  %v731 = vmul.f32 %v497, %v686
  %v732 = vmul.f32 %v500, %v691
  %v733 = vmul.f32 %v505, %v696
  %v734 = vmul.f32 %v508, %v701
  %s735 = sshra.s32 %s29, 3
  %s736 = sand.u32 %s29, 7
  %s737 = smul.addr %s735, 4
  %s738 = scalar_lea.vmem %s1, %s737
  %v739 = vld [vmem:[%s738] sm:$0xf]
  %v740 = vld [vmem:[%s738 + $0x4] sm:$0xf]
  %v741 = vld [vmem:[%s738 + $0x8] sm:$0xf]
  %v742 = vld [vmem:[%s738 + $0xc] sm:$0xf]
  %v743 = vld [vmem:[%s738 + $0x10] sm:$0xf]
  %v744 = vld [vmem:[%s738 + $0x14] sm:$0xf]
  %v745 = vld [vmem:[%s738 + $0x18] sm:$0xf]
  %v746 = vld [vmem:[%s738 + $0x1c] sm:$0xf]
  %v747 = vld [vmem:[%s738 + $0x20] sm:$0xf]
  %v748 = vld [vmem:[%s738 + $0x24] sm:$0xf]
  %v749 = vld [vmem:[%s738 + $0x28] sm:$0xf]
  %v750 = vld [vmem:[%s738 + $0x2c] sm:$0xf]
  %v751 = vld [vmem:[%s738 + $0x30] sm:$0xf]
  %v752 = vld [vmem:[%s738 + $0x34] sm:$0xf]
  %v753 = vld [vmem:[%s738 + $0x38] sm:$0xf]
  %v754 = vld [vmem:[%s738 + $0x3c] sm:$0xf]
  %v755 = vld [vmem:[%s738 + $0x40] sm:$0xf]
  %v756 = vld [vmem:[%s738 + $0x44] sm:$0xf]
  %v757 = vld [vmem:[%s738 + $0x48] sm:$0xf]
  %v758 = vld [vmem:[%s738 + $0x4c] sm:$0xf]
  %v759 = vld [vmem:[%s738 + $0x50] sm:$0xf]
  %v760 = vld [vmem:[%s738 + $0x54] sm:$0xf]
  %v761 = vld [vmem:[%s738 + $0x58] sm:$0xf]
  %v762 = vld [vmem:[%s738 + $0x5c] sm:$0xf]
  %v763 = vld [vmem:[%s738 + $0x60] sm:$0xf]
  %v764 = vld [vmem:[%s738 + $0x64] sm:$0xf]
  %v765 = vld [vmem:[%s738 + $0x68] sm:$0xf]
  %v766 = vld [vmem:[%s738 + $0x6c] sm:$0xf]
  %v767 = vld [vmem:[%s738 + $0x70] sm:$0xf]
  %v768 = vld [vmem:[%s738 + $0x74] sm:$0xf]
  %v769 = vld [vmem:[%s738 + $0x78] sm:$0xf]
  %v770 = vld [vmem:[%s738 + $0x7c] sm:$0xf]
  %v771 = vpack.c.bf16 %v704, %v703
  %v772 = vpack.c.bf16 %v706, %v705
  %v773 = vpack.c.bf16 %v708, %v707
  %v774 = vpack.c.bf16 %v710, %v709
  %v775 = vpack.c.bf16 %v712, %v711
  %v776 = vpack.c.bf16 %v714, %v713
  %v777 = vpack.c.bf16 %v716, %v715
  %v778 = vpack.c.bf16 %v718, %v717
  %v779 = vpack.c.bf16 %v720, %v719
  %v780 = vpack.c.bf16 %v722, %v721
  %v781 = vpack.c.bf16 %v724, %v723
  %v782 = vpack.c.bf16 %v726, %v725
  %v783 = vpack.c.bf16 %v728, %v727
  %v784 = vpack.c.bf16 %v730, %v729
  %v785 = vpack.c.bf16 %v732, %v731
  %v786 = vpack.c.bf16 %v734, %v733
  %v787 = vld [vmem:[%s3] sm:$0xf]
  %v788 = vld [vmem:[%s3 + $0x4] sm:$0xf]
  %v789 = vld [vmem:[%s3 + $0x8] sm:$0xf]
  %v790 = vld [vmem:[%s3 + $0xc] sm:$0xf]
  %v791 = vld [vmem:[%s3 + $0x10] sm:$0xf]
  %v792 = vld [vmem:[%s3 + $0x14] sm:$0xf]
  %v793 = vld [vmem:[%s3 + $0x18] sm:$0xf]
  %v794 = vld [vmem:[%s3 + $0x1c] sm:$0xf]
  %v795 = vld [vmem:[%s3 + $0x20] sm:$0xf]
  %v796 = vld [vmem:[%s3 + $0x24] sm:$0xf]
  %v797 = vld [vmem:[%s3 + $0x28] sm:$0xf]
  %v798 = vld [vmem:[%s3 + $0x2c] sm:$0xf]
  %v799 = vld [vmem:[%s3 + $0x30] sm:$0xf]
  %v800 = vld [vmem:[%s3 + $0x34] sm:$0xf]
  %v801 = vld [vmem:[%s3 + $0x38] sm:$0xf]
  %v802 = vld [vmem:[%s3 + $0x3c] sm:$0xf]
  %v803 = vld [vmem:[%s4] sm:$0xf]
  %v804 = vld [vmem:[%s4 + $0x4] sm:$0xf]
  %v805 = vld [vmem:[%s4 + $0x8] sm:$0xf]
  %v806 = vld [vmem:[%s4 + $0xc] sm:$0xf]
  %v807 = vld [vmem:[%s4 + $0x10] sm:$0xf]
  %v808 = vld [vmem:[%s4 + $0x14] sm:$0xf]
  %v809 = vld [vmem:[%s4 + $0x18] sm:$0xf]
  %v810 = vld [vmem:[%s4 + $0x1c] sm:$0xf]
  %v811 = vld [vmem:[%s4 + $0x20] sm:$0xf]
  %v812 = vld [vmem:[%s4 + $0x24] sm:$0xf]
  %v813 = vld [vmem:[%s4 + $0x28] sm:$0xf]
  %v814 = vld [vmem:[%s4 + $0x2c] sm:$0xf]
  %v815 = vld [vmem:[%s4 + $0x30] sm:$0xf]
  %v816 = vld [vmem:[%s4 + $0x34] sm:$0xf]
  %v817 = vld [vmem:[%s4 + $0x38] sm:$0xf]
  %v818 = vld [vmem:[%s4 + $0x3c] sm:$0xf]
  %v851 = vunpack.c.l.b16 %v739
  %v852 = vunpack.c.l.b16 %v740
  %v853 = vunpack.c.l.b16 %v741
  %v854 = vunpack.c.l.b16 %v742
  %v855 = vunpack.c.l.b16 %v743
  %v856 = vunpack.c.l.b16 %v744
  %v857 = vunpack.c.l.b16 %v745
  %v858 = vunpack.c.l.b16 %v746
  %v859 = vunpack.c.l.b16 %v747
  %v860 = vunpack.c.l.b16 %v748
  %v861 = vunpack.c.l.b16 %v749
  %v862 = vunpack.c.l.b16 %v750
  %v863 = vunpack.c.l.b16 %v751
  %v864 = vunpack.c.l.b16 %v752
  %v865 = vunpack.c.l.b16 %v753
  %v866 = vunpack.c.l.b16 %v754
  %v867 = vunpack.c.l.b16 %v755
  %v868 = vunpack.c.l.b16 %v756
  %v869 = vunpack.c.l.b16 %v757
  %v870 = vunpack.c.l.b16 %v758
  %v871 = vunpack.c.l.b16 %v759
  %v872 = vunpack.c.l.b16 %v760
  %v873 = vunpack.c.l.b16 %v761
  %v874 = vunpack.c.l.b16 %v762
  %v875 = vunpack.c.l.b16 %v763
  %v876 = vunpack.c.l.b16 %v764
  %v877 = vunpack.c.l.b16 %v765
  %v878 = vunpack.c.l.b16 %v766
  %v879 = vunpack.c.l.b16 %v767
  %v880 = vunpack.c.l.b16 %v768
  %v881 = vunpack.c.l.b16 %v769
  %v882 = vunpack.c.l.b16 %v770
  %v883 = vpack.c.b16 %v852, %v851
  %v884 = vpack.c.b16 %v854, %v853
  %v885 = vpack.c.b16 %v856, %v855
  %v886 = vpack.c.b16 %v858, %v857
  %v887 = vpack.c.b16 %v860, %v859
  %v888 = vpack.c.b16 %v862, %v861
  %v889 = vpack.c.b16 %v864, %v863
  %v890 = vpack.c.b16 %v866, %v865
  %v891 = vpack.c.b16 %v868, %v867
  %v892 = vpack.c.b16 %v870, %v869
  %v893 = vpack.c.b16 %v872, %v871
  %v894 = vpack.c.b16 %v874, %v873
  %v895 = vpack.c.b16 %v876, %v875
  %v896 = vpack.c.b16 %v878, %v877
  %v897 = vpack.c.b16 %v880, %v879
  %v898 = vpack.c.b16 %v882, %v881
  %v931 = vunpack.c.l.b16 %v803
  %v932 = vunpack.c.l.b16 %v804
  %v933 = vunpack.c.l.b16 %v805
  %v934 = vunpack.c.l.b16 %v806
  %v935 = vunpack.c.l.b16 %v807
  %v936 = vunpack.c.l.b16 %v808
  %v937 = vunpack.c.l.b16 %v809
  %v938 = vunpack.c.l.b16 %v810
  %v939 = vunpack.c.l.b16 %v811
  %v940 = vunpack.c.l.b16 %v812
  %v941 = vunpack.c.l.b16 %v813
  %v942 = vunpack.c.l.b16 %v814
  %v943 = vunpack.c.l.b16 %v815
  %v944 = vunpack.c.l.b16 %v816
  %v945 = vunpack.c.l.b16 %v817
  %v946 = vunpack.c.l.b16 %v818
  %v947 = vpack.c.b16 %v932, %v931
  %v948 = vpack.c.b16 %v934, %v933
  %v949 = vpack.c.b16 %v936, %v935
  %v950 = vpack.c.b16 %v938, %v937
  %v951 = vpack.c.b16 %v940, %v939
  %v952 = vpack.c.b16 %v942, %v941
  %v953 = vpack.c.b16 %v944, %v943
  %v954 = vpack.c.b16 %v946, %v945
  %963 = vmatprep.subr.bf16.mxu0 0
  %964 = vmatpush1.bf16.msra.mxu0 %v954
  %965 = vmatprep.subr.bf16.mxu0 0
  %966 = vmatpush1.bf16.msra.mxu0 %v953
  %967 = vmatprep.subr.bf16.mxu0 0
  %968 = vmatpush1.bf16.msra.mxu0 %v952
  %969 = vmatprep.subr.bf16.mxu0 0
  %970 = vmatpush1.bf16.msra.mxu0 %v951
  %971 = vmatprep.subr.bf16.mxu0 0
  %972 = vmatpush1.bf16.msra.mxu0 %v950
  %973 = vmatprep.subr.bf16.mxu0 0
  %974 = vmatpush1.bf16.msra.mxu0 %v949
  %975 = vmatprep.subr.bf16.mxu0 0
  %976 = vmatpush1.bf16.msra.mxu0 %v948
  %977 = vmatprep.subr.bf16.mxu0 0
  %978 = vmatpush1.bf16.msra.mxu0 %v947
  %979 = vmatprep.subr.bf16.mxu0 0
  %980 = vmatpush2.bf16.msra.mxu0 0
  %981 = vmatprep.subr.bf16.mxu0 0
  %982 = vmatpush2.bf16.msra.mxu0 0
  %983 = vmatprep.subr.bf16.mxu0 0
  %984 = vmatpush2.bf16.msra.mxu0 0
  %985 = vmatprep.subr.bf16.mxu0 0
  %986 = vmatpush2.bf16.msra.mxu0 0
  %987 = vmatprep.subr.bf16.mxu0 0
  %988 = vmatpush2.bf16.msra.mxu0 0
  %989 = vmatprep.subr.bf16.mxu0 0
  %990 = vmatpush2.bf16.msra.mxu0 0
  %991 = vmatprep.subr.bf16.mxu0 0
  %992 = vmatpush2.bf16.msra.mxu0 0
  %993 = vmatprep.subr.bf16.mxu0 0
  %994 = vmatpush2.bf16.msra.mxu0 0
  %995 = vmatprep.mubr.bf16.mxu0 0
  %996 = vmatmul.mubr.bf16.gmra.mxu0 %v883
  %v997 = vpop.f32.mrf.mxu0
  %v998 = vadd.f32 0.0, %v997
  %v999 = vpop.f32.mrf.mxu0
  %v1000 = vpop.f32.mrf.mxu0
  %v1001 = vadd.f32 0.0, %v1000
  %v1002 = vpop.f32.mrf.mxu0
  %1003 = vmatprep.mubr.bf16.mxu0 0
  %1004 = vmatmul.mubr.bf16.gmra.mxu0 %v884
  %v1005 = vpop.f32.mrf.mxu0
  %v1006 = vadd.f32 0.0, %v1005
  %v1007 = vpop.f32.mrf.mxu0
  %v1008 = vpop.f32.mrf.mxu0
  %v1009 = vadd.f32 0.0, %v1008
  %v1010 = vpop.f32.mrf.mxu0
  %1011 = vmatprep.mubr.bf16.mxu0 0
  %1012 = vmatmul.mubr.bf16.gmra.mxu0 %v885
  %v1013 = vpop.f32.mrf.mxu0
  %v1014 = vadd.f32 0.0, %v1013
  %v1015 = vpop.f32.mrf.mxu0
  %v1016 = vpop.f32.mrf.mxu0
  %v1017 = vadd.f32 0.0, %v1016
  %v1018 = vpop.f32.mrf.mxu0
  %1019 = vmatprep.mubr.bf16.mxu0 0
  %1020 = vmatmul.mubr.bf16.gmra.mxu0 %v886
  %v1021 = vpop.f32.mrf.mxu0
  %v1022 = vadd.f32 0.0, %v1021
  %v1023 = vpop.f32.mrf.mxu0
  %v1024 = vpop.f32.mrf.mxu0
  %v1025 = vadd.f32 0.0, %v1024
  %v1026 = vpop.f32.mrf.mxu0
  %1027 = vmatprep.mubr.bf16.mxu0 0
  %1028 = vmatmul.mubr.bf16.gmra.mxu0 %v887
  %v1029 = vpop.f32.mrf.mxu0
  %v1030 = vadd.f32 0.0, %v1029
  %v1031 = vpop.f32.mrf.mxu0
  %v1032 = vpop.f32.mrf.mxu0
  %v1033 = vadd.f32 0.0, %v1032
  %v1034 = vpop.f32.mrf.mxu0
  %1035 = vmatprep.mubr.bf16.mxu0 0
  %1036 = vmatmul.mubr.bf16.gmra.mxu0 %v888
  %v1037 = vpop.f32.mrf.mxu0
  %v1038 = vadd.f32 0.0, %v1037
  %v1039 = vpop.f32.mrf.mxu0
  %v1040 = vpop.f32.mrf.mxu0
  %v1041 = vadd.f32 0.0, %v1040
  %v1042 = vpop.f32.mrf.mxu0
  %1043 = vmatprep.mubr.bf16.mxu0 0
  %1044 = vmatmul.mubr.bf16.gmra.mxu0 %v889
  %v1045 = vpop.f32.mrf.mxu0
  %v1046 = vadd.f32 0.0, %v1045
  %v1047 = vpop.f32.mrf.mxu0
  %v1048 = vpop.f32.mrf.mxu0
  %v1049 = vadd.f32 0.0, %v1048
  %v1050 = vpop.f32.mrf.mxu0
  %1051 = vmatprep.mubr.bf16.mxu0 0
  %1052 = vmatmul.mubr.bf16.gmra.mxu0 %v890
  %v1053 = vpop.f32.mrf.mxu0
  %v1054 = vadd.f32 0.0, %v1053
  %v1055 = vpop.f32.mrf.mxu0
  %v1056 = vpop.f32.mrf.mxu0
  %v1057 = vadd.f32 0.0, %v1056
  %v1058 = vpop.f32.mrf.mxu0
  %1059 = vmatprep.mubr.bf16.mxu0 0
  %1060 = vmatmul.mubr.bf16.gmra.mxu0 %v891
  %v1061 = vpop.f32.mrf.mxu0
  %v1062 = vadd.f32 0.0, %v1061
  %v1063 = vpop.f32.mrf.mxu0
  %v1064 = vpop.f32.mrf.mxu0
  %v1065 = vadd.f32 0.0, %v1064
  %v1066 = vpop.f32.mrf.mxu0
  %1067 = vmatprep.mubr.bf16.mxu0 0
  %1068 = vmatmul.mubr.bf16.gmra.mxu0 %v892
  %v1069 = vpop.f32.mrf.mxu0
  %v1070 = vadd.f32 0.0, %v1069
  %v1071 = vpop.f32.mrf.mxu0
  %v1072 = vpop.f32.mrf.mxu0
  %v1073 = vadd.f32 0.0, %v1072
  %v1074 = vpop.f32.mrf.mxu0
  %1075 = vmatprep.mubr.bf16.mxu0 0
  %1076 = vmatmul.mubr.bf16.gmra.mxu0 %v893
  %v1077 = vpop.f32.mrf.mxu0
  %v1078 = vadd.f32 0.0, %v1077
  %v1079 = vpop.f32.mrf.mxu0
  %v1080 = vpop.f32.mrf.mxu0
  %v1081 = vadd.f32 0.0, %v1080
  %v1082 = vpop.f32.mrf.mxu0
  %1083 = vmatprep.mubr.bf16.mxu0 0
  %1084 = vmatmul.mubr.bf16.gmra.mxu0 %v894
  %v1085 = vpop.f32.mrf.mxu0
  %v1086 = vadd.f32 0.0, %v1085
  %v1087 = vpop.f32.mrf.mxu0
  %v1088 = vpop.f32.mrf.mxu0
  %v1089 = vadd.f32 0.0, %v1088
  %v1090 = vpop.f32.mrf.mxu0
  %1091 = vmatprep.mubr.bf16.mxu0 0
  %1092 = vmatmul.mubr.bf16.gmra.mxu0 %v895
  %v1093 = vpop.f32.mrf.mxu0
  %v1094 = vadd.f32 0.0, %v1093
  %v1095 = vpop.f32.mrf.mxu0
  %v1096 = vpop.f32.mrf.mxu0
  %v1097 = vadd.f32 0.0, %v1096
  %v1098 = vpop.f32.mrf.mxu0
  %1099 = vmatprep.mubr.bf16.mxu0 0
  %1100 = vmatmul.mubr.bf16.gmra.mxu0 %v896
  %v1101 = vpop.f32.mrf.mxu0
  %v1102 = vadd.f32 0.0, %v1101
  %v1103 = vpop.f32.mrf.mxu0
  %v1104 = vpop.f32.mrf.mxu0
  %v1105 = vadd.f32 0.0, %v1104
  %v1106 = vpop.f32.mrf.mxu0
  %1107 = vmatprep.mubr.bf16.mxu0 0
  %1108 = vmatmul.mubr.bf16.gmra.mxu0 %v897
  %v1109 = vpop.f32.mrf.mxu0
  %v1110 = vadd.f32 0.0, %v1109
  %v1111 = vpop.f32.mrf.mxu0
  %v1112 = vpop.f32.mrf.mxu0
  %v1113 = vadd.f32 0.0, %v1112
  %v1114 = vpop.f32.mrf.mxu0
  %1115 = vmatprep.mubr.bf16.mxu0 0
  %1116 = vmatmul.mubr.bf16.gmra.mxu0 %v898
  %v1117 = vpop.f32.mrf.mxu0
  %v1118 = vadd.f32 0.0, %v1117
  %v1119 = vpop.f32.mrf.mxu0
  %v1120 = vpop.f32.mrf.mxu0
  %v1121 = vadd.f32 0.0, %v1120
  %v1122 = vpop.f32.mrf.mxu0
  %1123 = vdwg.mxu0
  %v1140 = vunpack.c.l.b16 %v787
  %v1141 = vunpack.c.l.b16 %v788
  %v1142 = vunpack.c.l.b16 %v789
  %v1143 = vunpack.c.l.b16 %v790
  %v1144 = vunpack.c.l.b16 %v791
  %v1145 = vunpack.c.l.b16 %v792
  %v1146 = vunpack.c.l.b16 %v793
  %v1147 = vunpack.c.l.b16 %v794
  %v1148 = vunpack.c.l.b16 %v795
  %v1149 = vunpack.c.l.b16 %v796
  %v1150 = vunpack.c.l.b16 %v797
  %v1151 = vunpack.c.l.b16 %v798
  %v1152 = vunpack.c.l.b16 %v799
  %v1153 = vunpack.c.l.b16 %v800
  %v1154 = vunpack.c.l.b16 %v801
  %v1155 = vunpack.c.l.b16 %v802
  %v1156 = vpack.c.b16 %v1141, %v1140
  %v1157 = vpack.c.b16 %v1143, %v1142
  %v1158 = vpack.c.b16 %v1145, %v1144
  %v1159 = vpack.c.b16 %v1147, %v1146
  %v1160 = vpack.c.b16 %v1149, %v1148
  %v1161 = vpack.c.b16 %v1151, %v1150
  %v1162 = vpack.c.b16 %v1153, %v1152
  %v1163 = vpack.c.b16 %v1155, %v1154
  %1172 = vmatprep.subr.bf16.mxu0 0
  %1173 = vmatpush1.bf16.msra.mxu0 %v1163
  %1174 = vmatprep.subr.bf16.mxu0 0
  %1175 = vmatpush1.bf16.msra.mxu0 %v1162
  %1176 = vmatprep.subr.bf16.mxu0 0
  %1177 = vmatpush1.bf16.msra.mxu0 %v1161
  %1178 = vmatprep.subr.bf16.mxu0 0
  %1179 = vmatpush1.bf16.msra.mxu0 %v1160
  %1180 = vmatprep.subr.bf16.mxu0 0
  %1181 = vmatpush1.bf16.msra.mxu0 %v1159
  %1182 = vmatprep.subr.bf16.mxu0 0
  %1183 = vmatpush1.bf16.msra.mxu0 %v1158
  %1184 = vmatprep.subr.bf16.mxu0 0
  %1185 = vmatpush1.bf16.msra.mxu0 %v1157
  %1186 = vmatprep.subr.bf16.mxu0 0
  %1187 = vmatpush1.bf16.msra.mxu0 %v1156
  %1188 = vmatprep.subr.bf16.mxu0 0
  %1189 = vmatpush2.bf16.msra.mxu0 0
  %1190 = vmatprep.subr.bf16.mxu0 0
  %1191 = vmatpush2.bf16.msra.mxu0 0
  %1192 = vmatprep.subr.bf16.mxu0 0
  %1193 = vmatpush2.bf16.msra.mxu0 0
  %1194 = vmatprep.subr.bf16.mxu0 0
  %1195 = vmatpush2.bf16.msra.mxu0 0
  %1196 = vmatprep.subr.bf16.mxu0 0
  %1197 = vmatpush2.bf16.msra.mxu0 0
  %1198 = vmatprep.subr.bf16.mxu0 0
  %1199 = vmatpush2.bf16.msra.mxu0 0
  %1200 = vmatprep.subr.bf16.mxu0 0
  %1201 = vmatpush2.bf16.msra.mxu0 0
  %1202 = vmatprep.subr.bf16.mxu0 0
  %1203 = vmatpush2.bf16.msra.mxu0 0
  %1204 = vmatprep.mubr.bf16.mxu0 0
  %1205 = vmatmul.mubr.bf16.gmra.mxu0 %v771
  %v1206 = vpop.f32.mrf.mxu0
  %v1207 = vadd.f32 %v998, %v1206
  %v1208 = vpop.f32.mrf.mxu0
  %v1209 = vpop.f32.mrf.mxu0
  %v1210 = vadd.f32 %v1001, %v1209
  %v1211 = vpop.f32.mrf.mxu0
  %1212 = vmatprep.mubr.bf16.mxu0 0
  %1213 = vmatmul.mubr.bf16.gmra.mxu0 %v772
  %v1214 = vpop.f32.mrf.mxu0
  %v1215 = vadd.f32 %v1006, %v1214
  %v1216 = vpop.f32.mrf.mxu0
  %v1217 = vpop.f32.mrf.mxu0
  %v1218 = vadd.f32 %v1009, %v1217
  %v1219 = vpop.f32.mrf.mxu0
  %1220 = vmatprep.mubr.bf16.mxu0 0
  %1221 = vmatmul.mubr.bf16.gmra.mxu0 %v773
  %v1222 = vpop.f32.mrf.mxu0
  %v1223 = vadd.f32 %v1014, %v1222
  %v1224 = vpop.f32.mrf.mxu0
  %v1225 = vpop.f32.mrf.mxu0
  %v1226 = vadd.f32 %v1017, %v1225
  %v1227 = vpop.f32.mrf.mxu0
  %1228 = vmatprep.mubr.bf16.mxu0 0
  %1229 = vmatmul.mubr.bf16.gmra.mxu0 %v774
  %v1230 = vpop.f32.mrf.mxu0
  %v1231 = vadd.f32 %v1022, %v1230
  %v1232 = vpop.f32.mrf.mxu0
  %v1233 = vpop.f32.mrf.mxu0
  %v1234 = vadd.f32 %v1025, %v1233
  %v1235 = vpop.f32.mrf.mxu0
  %1236 = vmatprep.mubr.bf16.mxu0 0
  %1237 = vmatmul.mubr.bf16.gmra.mxu0 %v775
  %v1238 = vpop.f32.mrf.mxu0
  %v1239 = vadd.f32 %v1030, %v1238
  %v1240 = vpop.f32.mrf.mxu0
  %v1241 = vpop.f32.mrf.mxu0
  %v1242 = vadd.f32 %v1033, %v1241
  %v1243 = vpop.f32.mrf.mxu0
  %1244 = vmatprep.mubr.bf16.mxu0 0
  %1245 = vmatmul.mubr.bf16.gmra.mxu0 %v776
  %v1246 = vpop.f32.mrf.mxu0
  %v1247 = vadd.f32 %v1038, %v1246
  %v1248 = vpop.f32.mrf.mxu0
  %v1249 = vpop.f32.mrf.mxu0
  %v1250 = vadd.f32 %v1041, %v1249
  %v1251 = vpop.f32.mrf.mxu0
  %1252 = vmatprep.mubr.bf16.mxu0 0
  %1253 = vmatmul.mubr.bf16.gmra.mxu0 %v777
  %v1254 = vpop.f32.mrf.mxu0
  %v1255 = vadd.f32 %v1046, %v1254
  %v1256 = vpop.f32.mrf.mxu0
  %v1257 = vpop.f32.mrf.mxu0
  %v1258 = vadd.f32 %v1049, %v1257
  %v1259 = vpop.f32.mrf.mxu0
  %1260 = vmatprep.mubr.bf16.mxu0 0
  %1261 = vmatmul.mubr.bf16.gmra.mxu0 %v778
  %v1262 = vpop.f32.mrf.mxu0
  %v1263 = vadd.f32 %v1054, %v1262
  %v1264 = vpop.f32.mrf.mxu0
  %v1265 = vpop.f32.mrf.mxu0
  %v1266 = vadd.f32 %v1057, %v1265
  %v1267 = vpop.f32.mrf.mxu0
  %1268 = vmatprep.mubr.bf16.mxu0 0
  %1269 = vmatmul.mubr.bf16.gmra.mxu0 %v779
  %v1270 = vpop.f32.mrf.mxu0
  %v1271 = vadd.f32 %v1062, %v1270
  %v1272 = vpop.f32.mrf.mxu0
  %v1273 = vpop.f32.mrf.mxu0
  %v1274 = vadd.f32 %v1065, %v1273
  %v1275 = vpop.f32.mrf.mxu0
  %1276 = vmatprep.mubr.bf16.mxu0 0
  %1277 = vmatmul.mubr.bf16.gmra.mxu0 %v780
  %v1278 = vpop.f32.mrf.mxu0
  %v1279 = vadd.f32 %v1070, %v1278
  %v1280 = vpop.f32.mrf.mxu0
  %v1281 = vpop.f32.mrf.mxu0
  %v1282 = vadd.f32 %v1073, %v1281
  %v1283 = vpop.f32.mrf.mxu0
  %1284 = vmatprep.mubr.bf16.mxu0 0
  %1285 = vmatmul.mubr.bf16.gmra.mxu0 %v781
  %v1286 = vpop.f32.mrf.mxu0
  %v1287 = vadd.f32 %v1078, %v1286
  %v1288 = vpop.f32.mrf.mxu0
  %v1289 = vpop.f32.mrf.mxu0
  %v1290 = vadd.f32 %v1081, %v1289
  %v1291 = vpop.f32.mrf.mxu0
  %1292 = vmatprep.mubr.bf16.mxu0 0
  %1293 = vmatmul.mubr.bf16.gmra.mxu0 %v782
  %v1294 = vpop.f32.mrf.mxu0
  %v1295 = vadd.f32 %v1086, %v1294
  %v1296 = vpop.f32.mrf.mxu0
  %v1297 = vpop.f32.mrf.mxu0
  %v1298 = vadd.f32 %v1089, %v1297
  %v1299 = vpop.f32.mrf.mxu0
  %1300 = vmatprep.mubr.bf16.mxu0 0
  %1301 = vmatmul.mubr.bf16.gmra.mxu0 %v783
  %v1302 = vpop.f32.mrf.mxu0
  %v1303 = vadd.f32 %v1094, %v1302
  %v1304 = vpop.f32.mrf.mxu0
  %v1305 = vpop.f32.mrf.mxu0
  %v1306 = vadd.f32 %v1097, %v1305
  %v1307 = vpop.f32.mrf.mxu0
  %1308 = vmatprep.mubr.bf16.mxu0 0
  %1309 = vmatmul.mubr.bf16.gmra.mxu0 %v784
  %v1310 = vpop.f32.mrf.mxu0
  %v1311 = vadd.f32 %v1102, %v1310
  %v1312 = vpop.f32.mrf.mxu0
  %v1313 = vpop.f32.mrf.mxu0
  %v1314 = vadd.f32 %v1105, %v1313
  %v1315 = vpop.f32.mrf.mxu0
  %1316 = vmatprep.mubr.bf16.mxu0 0
  %1317 = vmatmul.mubr.bf16.gmra.mxu0 %v785
  %v1318 = vpop.f32.mrf.mxu0
  %v1319 = vadd.f32 %v1110, %v1318
  %v1320 = vpop.f32.mrf.mxu0
  %v1321 = vpop.f32.mrf.mxu0
  %v1322 = vadd.f32 %v1113, %v1321
  %v1323 = vpop.f32.mrf.mxu0
  %1324 = vmatprep.mubr.bf16.mxu0 0
  %1325 = vmatmul.mubr.bf16.gmra.mxu0 %v786
  %v1326 = vpop.f32.mrf.mxu0
  %v1327 = vadd.f32 %v1118, %v1326
  %v1328 = vpop.f32.mrf.mxu0
  %v1329 = vpop.f32.mrf.mxu0
  %v1330 = vadd.f32 %v1121, %v1329
  %v1331 = vpop.f32.mrf.mxu0
  %1332 = vdwg.mxu0
  %v1333 = vld [vmem:[%s5] sm:$0x1]
  %v1335 = vlaneseq
  %v1336 = vshrl.u32 %v1335, 7
  %v1337 = vsub.s32 0, %v1336
  %v1338 = vrot.slane %v1333, %v1337
  %v1340 = vadd.f32 %v1207, %v1338
  %v1341 = vadd.f32 %v1210, %v1338
  %v1342 = vadd.f32 %v1215, %v1338
  %v1343 = vadd.f32 %v1218, %v1338
  %v1344 = vadd.f32 %v1223, %v1338
  %v1345 = vadd.f32 %v1226, %v1338
  %v1346 = vadd.f32 %v1231, %v1338
  %v1347 = vadd.f32 %v1234, %v1338
  %v1348 = vadd.f32 %v1239, %v1338
  %v1349 = vadd.f32 %v1242, %v1338
  %v1350 = vadd.f32 %v1247, %v1338
  %v1351 = vadd.f32 %v1250, %v1338
  %v1352 = vadd.f32 %v1255, %v1338
  %v1353 = vadd.f32 %v1258, %v1338
  %v1354 = vadd.f32 %v1263, %v1338
  %v1355 = vadd.f32 %v1266, %v1338
  %v1356 = vadd.f32 %v1271, %v1338
  %v1357 = vadd.f32 %v1274, %v1338
  %v1358 = vadd.f32 %v1279, %v1338
  %v1359 = vadd.f32 %v1282, %v1338
  %v1360 = vadd.f32 %v1287, %v1338
  %v1361 = vadd.f32 %v1290, %v1338
  %v1362 = vadd.f32 %v1295, %v1338
  %v1363 = vadd.f32 %v1298, %v1338
  %v1364 = vadd.f32 %v1303, %v1338
  %v1365 = vadd.f32 %v1306, %v1338
  %v1366 = vadd.f32 %v1311, %v1338
  %v1367 = vadd.f32 %v1314, %v1338
  %v1368 = vadd.f32 %v1319, %v1338
  %v1369 = vadd.f32 %v1322, %v1338
  %v1370 = vadd.f32 %v1327, %v1338
  %v1371 = vadd.f32 %v1330, %v1338
  %v1372 = vmax.f32 %v1340, 0.0
  %v1373 = vmax.f32 %v1341, 0.0
  %v1374 = vmax.f32 %v1342, 0.0
  %v1375 = vmax.f32 %v1343, 0.0
  %v1376 = vmax.f32 %v1344, 0.0
  %v1377 = vmax.f32 %v1345, 0.0
  %v1378 = vmax.f32 %v1346, 0.0
  %v1379 = vmax.f32 %v1347, 0.0
  %v1380 = vmax.f32 %v1348, 0.0
  %v1381 = vmax.f32 %v1349, 0.0
  %v1382 = vmax.f32 %v1350, 0.0
  %v1383 = vmax.f32 %v1351, 0.0
  %v1384 = vmax.f32 %v1352, 0.0
  %v1385 = vmax.f32 %v1353, 0.0
  %v1386 = vmax.f32 %v1354, 0.0
  %v1387 = vmax.f32 %v1355, 0.0
  %v1388 = vmax.f32 %v1356, 0.0
  %v1389 = vmax.f32 %v1357, 0.0
  %v1390 = vmax.f32 %v1358, 0.0
  %v1391 = vmax.f32 %v1359, 0.0
  %v1392 = vmax.f32 %v1360, 0.0
  %v1393 = vmax.f32 %v1361, 0.0
  %v1394 = vmax.f32 %v1362, 0.0
  %v1395 = vmax.f32 %v1363, 0.0
  %v1396 = vmax.f32 %v1364, 0.0
  %v1397 = vmax.f32 %v1365, 0.0
  %v1398 = vmax.f32 %v1366, 0.0
  %v1399 = vmax.f32 %v1367, 0.0
  %v1400 = vmax.f32 %v1368, 0.0
  %v1401 = vmax.f32 %v1369, 0.0
  %v1402 = vmax.f32 %v1370, 0.0
  %v1403 = vmax.f32 %v1371, 0.0
  %v1404 = vpack.c.bf16 %v1373, %v1372
  %v1405 = vpack.c.bf16 %v1375, %v1374
  %v1406 = vpack.c.bf16 %v1377, %v1376
  %v1407 = vpack.c.bf16 %v1379, %v1378
  %v1408 = vpack.c.bf16 %v1381, %v1380
  %v1409 = vpack.c.bf16 %v1383, %v1382
  %v1410 = vpack.c.bf16 %v1385, %v1384
  %v1411 = vpack.c.bf16 %v1387, %v1386
  %v1412 = vpack.c.bf16 %v1389, %v1388
  %v1413 = vpack.c.bf16 %v1391, %v1390
  %v1414 = vpack.c.bf16 %v1393, %v1392
  %v1415 = vpack.c.bf16 %v1395, %v1394
  %v1416 = vpack.c.bf16 %v1397, %v1396
  %v1417 = vpack.c.bf16 %v1399, %v1398
  %v1418 = vpack.c.bf16 %v1401, %v1400
  %v1419 = vpack.c.bf16 %v1403, %v1402
  %v1436 = vunpack.c.l.b16 %v1404
  %v1437 = vunpack.c.h.b16 %v1404
  %v1438 = vunpack.c.l.b16 %v1405
  %v1439 = vunpack.c.h.b16 %v1405
  %v1440 = vunpack.c.l.b16 %v1406
  %v1441 = vunpack.c.h.b16 %v1406
  %v1442 = vunpack.c.l.b16 %v1407
  %v1443 = vunpack.c.h.b16 %v1407
  %v1444 = vunpack.c.l.b16 %v1408
  %v1445 = vunpack.c.h.b16 %v1408
  %v1446 = vunpack.c.l.b16 %v1409
  %v1447 = vunpack.c.h.b16 %v1409
  %v1448 = vunpack.c.l.b16 %v1410
  %v1449 = vunpack.c.h.b16 %v1410
  %v1450 = vunpack.c.l.b16 %v1411
  %v1451 = vunpack.c.h.b16 %v1411
  %v1452 = vunpack.c.l.b16 %v1412
  %v1453 = vunpack.c.h.b16 %v1412
  %v1454 = vunpack.c.l.b16 %v1413
  %v1455 = vunpack.c.h.b16 %v1413
  %v1456 = vunpack.c.l.b16 %v1414
  %v1457 = vunpack.c.h.b16 %v1414
  %v1458 = vunpack.c.l.b16 %v1415
  %v1459 = vunpack.c.h.b16 %v1415
  %v1460 = vunpack.c.l.b16 %v1416
  %v1461 = vunpack.c.h.b16 %v1416
  %v1462 = vunpack.c.l.b16 %v1417
  %v1463 = vunpack.c.h.b16 %v1417
  %v1464 = vunpack.c.l.b16 %v1418
  %v1465 = vunpack.c.h.b16 %v1418
  %v1466 = vunpack.c.l.b16 %v1419
  %v1467 = vunpack.c.h.b16 %v1419
  %v1468 = vpack.c.b16 %v1436, %v1436
  %v1469 = vpack.c.b16 %v1437, %v1437
  %v1470 = vpack.c.b16 %v1438, %v1438
  %v1471 = vpack.c.b16 %v1439, %v1439
  %v1472 = vpack.c.b16 %v1440, %v1440
  %v1473 = vpack.c.b16 %v1441, %v1441
  %v1474 = vpack.c.b16 %v1442, %v1442
  %v1475 = vpack.c.b16 %v1443, %v1443
  %v1476 = vpack.c.b16 %v1444, %v1444
  %v1477 = vpack.c.b16 %v1445, %v1445
  %v1478 = vpack.c.b16 %v1446, %v1446
  %v1479 = vpack.c.b16 %v1447, %v1447
  %v1480 = vpack.c.b16 %v1448, %v1448
  %v1481 = vpack.c.b16 %v1449, %v1449
  %v1482 = vpack.c.b16 %v1450, %v1450
  %v1483 = vpack.c.b16 %v1451, %v1451
  %v1484 = vpack.c.b16 %v1452, %v1452
  %v1485 = vpack.c.b16 %v1453, %v1453
  %v1486 = vpack.c.b16 %v1454, %v1454
  %v1487 = vpack.c.b16 %v1455, %v1455
  %v1488 = vpack.c.b16 %v1456, %v1456
  %v1489 = vpack.c.b16 %v1457, %v1457
  %v1490 = vpack.c.b16 %v1458, %v1458
  %v1491 = vpack.c.b16 %v1459, %v1459
  %v1492 = vpack.c.b16 %v1460, %v1460
  %v1493 = vpack.c.b16 %v1461, %v1461
  %v1494 = vpack.c.b16 %v1462, %v1462
  %v1495 = vpack.c.b16 %v1463, %v1463
  %v1496 = vpack.c.b16 %v1464, %v1464
  %v1497 = vpack.c.b16 %v1465, %v1465
  %v1498 = vpack.c.b16 %v1466, %v1466
  %v1499 = vpack.c.b16 %v1467, %v1467
  %1532 = vst [vmem:[%s7] sm:$0xf] %v1468
  %1533 = vst [vmem:[%s7 + $0x4] sm:$0xf] %v1469
  %1534 = vst [vmem:[%s7 + $0x8] sm:$0xf] %v1470
  %1535 = vst [vmem:[%s7 + $0xc] sm:$0xf] %v1471
  %1536 = vst [vmem:[%s7 + $0x10] sm:$0xf] %v1472
  %1537 = vst [vmem:[%s7 + $0x14] sm:$0xf] %v1473
  %1538 = vst [vmem:[%s7 + $0x18] sm:$0xf] %v1474
  %1539 = vst [vmem:[%s7 + $0x1c] sm:$0xf] %v1475
  %1540 = vst [vmem:[%s7 + $0x20] sm:$0xf] %v1476
  %1541 = vst [vmem:[%s7 + $0x24] sm:$0xf] %v1477
  %1542 = vst [vmem:[%s7 + $0x28] sm:$0xf] %v1478
  %1543 = vst [vmem:[%s7 + $0x2c] sm:$0xf] %v1479
  %1544 = vst [vmem:[%s7 + $0x30] sm:$0xf] %v1480
  %1545 = vst [vmem:[%s7 + $0x34] sm:$0xf] %v1481
  %1546 = vst [vmem:[%s7 + $0x38] sm:$0xf] %v1482
  %1547 = vst [vmem:[%s7 + $0x3c] sm:$0xf] %v1483
  %1548 = vst [vmem:[%s7 + $0x40] sm:$0xf] %v1484
  %1549 = vst [vmem:[%s7 + $0x44] sm:$0xf] %v1485
  %1550 = vst [vmem:[%s7 + $0x48] sm:$0xf] %v1486
  %1551 = vst [vmem:[%s7 + $0x4c] sm:$0xf] %v1487
  %1552 = vst [vmem:[%s7 + $0x50] sm:$0xf] %v1488
  %1553 = vst [vmem:[%s7 + $0x54] sm:$0xf] %v1489
  %1554 = vst [vmem:[%s7 + $0x58] sm:$0xf] %v1490
  %1555 = vst [vmem:[%s7 + $0x5c] sm:$0xf] %v1491
  %1556 = vst [vmem:[%s7 + $0x60] sm:$0xf] %v1492
  %1557 = vst [vmem:[%s7 + $0x64] sm:$0xf] %v1493
  %1558 = vst [vmem:[%s7 + $0x68] sm:$0xf] %v1494
  %1559 = vst [vmem:[%s7 + $0x6c] sm:$0xf] %v1495
  %1560 = vst [vmem:[%s7 + $0x70] sm:$0xf] %v1496
  %1561 = vst [vmem:[%s7 + $0x74] sm:$0xf] %v1497
  %1562 = vst [vmem:[%s7 + $0x78] sm:$0xf] %v1498
  %1563 = vst [vmem:[%s7 + $0x7c] sm:$0xf] %v1499
  %v1564 = vld [vmem:[%s6] sm:$0xff]
  %1565 = vmatprep.subr.mxu0 0.0
  %1566 = vmatpush1.xpose.msra.mxu0 %v1387
  %1567 = vmatprep.subr.mxu0 0.0
  %1568 = vmatpush1.xpose.msra.mxu0 %v1386
  %1569 = vmatprep.subr.mxu0 0.0
  %1570 = vmatpush1.xpose.msra.mxu0 %v1385
  %1571 = vmatprep.subr.mxu0 0.0
  %1572 = vmatpush1.xpose.msra.mxu0 %v1384
  %1573 = vmatprep.subr.mxu0 0.0
  %1574 = vmatpush1.xpose.msra.mxu0 %v1383
  %1575 = vmatprep.subr.mxu0 0.0
  %1576 = vmatpush1.xpose.msra.mxu0 %v1382
  %1577 = vmatprep.subr.mxu0 0.0
  %1578 = vmatpush1.xpose.msra.mxu0 %v1381
  %1579 = vmatprep.subr.mxu0 0.0
  %1580 = vmatpush1.xpose.msra.mxu0 %v1380
  %1581 = vmatprep.subr.mxu0 0.0
  %1582 = vmatpush1.xpose.msra.mxu0 %v1379
  %1583 = vmatprep.subr.mxu0 0.0
  %1584 = vmatpush1.xpose.msra.mxu0 %v1378
  %1585 = vmatprep.subr.mxu0 0.0
  %1586 = vmatpush1.xpose.msra.mxu0 %v1377
  %1587 = vmatprep.subr.mxu0 0.0
  %1588 = vmatpush1.xpose.msra.mxu0 %v1376
  %1589 = vmatprep.subr.mxu0 0.0
  %1590 = vmatpush1.xpose.msra.mxu0 %v1375
  %1591 = vmatprep.subr.mxu0 0.0
  %1592 = vmatpush1.xpose.msra.mxu0 %v1374
  %1593 = vmatprep.subr.mxu0 0.0
  %1594 = vmatpush1.xpose.msra.mxu0 %v1373
  %1595 = vmatprep.subr.mxu0 0.0
  %1596 = vmatpush1.xpose.msra.mxu0 %v1372
  %1597 = vmatprep.subr.mxu0 0.0
  %1598 = vmatpush2.xpose.msra.mxu0 %v1403
  %1599 = vmatprep.subr.mxu0 0.0
  %1600 = vmatpush2.xpose.msra.mxu0 %v1402
  %1601 = vmatprep.subr.mxu0 0.0
  %1602 = vmatpush2.xpose.msra.mxu0 %v1401
  %1603 = vmatprep.subr.mxu0 0.0
  %1604 = vmatpush2.xpose.msra.mxu0 %v1400
  %1605 = vmatprep.subr.mxu0 0.0
  %1606 = vmatpush2.xpose.msra.mxu0 %v1399
  %1607 = vmatprep.subr.mxu0 0.0
  %1608 = vmatpush2.xpose.msra.mxu0 %v1398
  %1609 = vmatprep.subr.mxu0 0.0
  %1610 = vmatpush2.xpose.msra.mxu0 %v1397
  %1611 = vmatprep.subr.mxu0 0.0
  %1612 = vmatpush2.xpose.msra.mxu0 %v1396
  %1613 = vmatprep.subr.mxu0 0.0
  %1614 = vmatpush2.xpose.msra.mxu0 %v1395
  %1615 = vmatprep.subr.mxu0 0.0
  %1616 = vmatpush2.xpose.msra.mxu0 %v1394
  %1617 = vmatprep.subr.mxu0 0.0
  %1618 = vmatpush2.xpose.msra.mxu0 %v1393
  %1619 = vmatprep.subr.mxu0 0.0
  %1620 = vmatpush2.xpose.msra.mxu0 %v1392
  %1621 = vmatprep.subr.mxu0 0.0
  %1622 = vmatpush2.xpose.msra.mxu0 %v1391
  %1623 = vmatprep.subr.mxu0 0.0
  %1624 = vmatpush2.xpose.msra.mxu0 %v1390
  %1625 = vmatprep.subr.mxu0 0.0
  %1626 = vmatpush2.xpose.msra.mxu0 %v1389
  %1627 = vmatprep.subr.mxu0 0.0
  %1628 = vmatpush2.xpose.msra.mxu0 %v1388
  %1629 = vmatprep.mubr.f32.mxu0 0.0
  %1630 = vmatmul.mubr.f32.gmra.mxu0 %v1564
  %v1631 = vpop.f32.mrf.mxu0
  %v1632 = vadd.f32 0.0, %v1631
  %v1633 = vpop.f32.mrf.mxu0
  %v1634 = vadd.f32 0.0, %v1633
  %1635 = vdwg.mxu0
  %1636 = vst [vmem:[%s8] sm:$0xff] %v1632
  %1637 = vst [vmem:[%s8 + $0x8] sm:$0xff] %v1634
  // Predicated region
  $region30: #{forward.4} parent=0 // pred_check
    _
  $region31: #{forward.4} parent=0 // pred_check_branch
    %1639 = sbr.rel (0) target = $region33
  $region32: #{forward.4} parent=0 // pred_region
    _
  $region33: #{forward.4} parent=0 // pred_fallthru
    _
  // Predicated region
  $region34: #{forward.4} parent=0 // pred_check
    _
  $region35: #{forward.4} parent=0 // pred_check_branch
    %1641 = sbr.rel (0) target = $region37
  $region36: #{forward.4} parent=0 // pred_region
    _
  $region37: #{forward.4} parent=0 // pred_fallthru
    _
  // Predicated region
  $region38: #{forward.4} parent=0 // pred_check
    _
  $region39: #{forward.4} parent=0 // pred_check_branch
    %1643 = sbr.rel (0) target = $region41
  $region40: #{forward.4} parent=0 // pred_region
    _
  $region41: #{forward.4} parent=0 // pred_fallthru
    _
  // Predicated region
  $region42: #{forward.4} parent=0 // pred_check
    _
  $region43: #{forward.4} parent=0 // pred_check_branch
    %1645 = sbr.rel (0) target = $region45
  $region44: #{forward.4} parent=0 // pred_region
    _
  $region45: #{forward.4} parent=0 // pred_fallthru
    _

</llo_original>
